<compile_context>
chip_gen: v7x
topology: tpu7x:2x2x1
jax: 0.10.0
libtpu: 0.0.40
codegen_flags: <defaults>
</compile_context>

<pallas_src>
import functools

import jax
import jax.numpy as jnp
from jax import lax
from jax.experimental import pallas as pl
from jax.experimental.pallas import tpu as pltpu

NUM_GROUPS = 32          # nn.GroupNorm(32, hidden_dim)
GN_EPS = 1e-5            # PyTorch GroupNorm default eps


# --------------------------------------------------------------------------
# Pallas kernel: fused 1x1 Conv (channel matmul) + two-pass tiled GroupNorm
# --------------------------------------------------------------------------
def _proj_gn_kernel(x_ref, w_ref, b_ref, gamma_ref, beta_ref, mcg_ref,
                    o_ref, stats_ref, *, num_groups, eps, n_total):
    # Channels-first tiles:
    #   x_ref:     (1, Cin, TN)  one batch element, one spatial tile (lane dim = N)
    #   w_ref:     (Ch, Cin)     1x1-conv weight, native PyTorch layout (squeezed)
    #   b/gamma/beta_ref: (Ch, 1) per-channel vectors, f32
    #   mcg_ref:   (Ch, G)       channel->group membership (hoisted to wrapper)
    #   o_ref:     (1, Ch, TN)
    #   stats_ref: (Ch, 4) f32   columns: [col_sum(z), col_sq(z), scale, shift]
    p = pl.program_id(1)        # 0: stats pass, 1: normalize pass
    ti = pl.program_id(2)       # spatial (N) tile index

    ch = w_ref.shape[0]
    cg = ch // num_groups

    @pl.when((p == 0) & (ti == 0))
    def _init():
        stats_ref[...] = jnp.zeros_like(stats_ref)

    # 1x1 convolution == channel matmul on the MXU: (Ch, Cin) @ (Cin, TN).
    # Recomputed in both passes; with the single-N-tile path (common case now)
    # x is not re-fetched from HBM between passes.
    # TODO(synk): for high-Cin levels (Cin >= ~2*Ch, e.g. 2048->256) a z-writeback
    # variant (write z into the output in pass 0, alias it back in pass 1) halves
    # the MXU FLOPs and HBM reads; not needed at these shapes.
    z = jnp.dot(w_ref[...], x_ref[0], preferred_element_type=jnp.float32)

    @pl.when(p == 0)
    def _accumulate():
        s1 = jnp.sum(z, axis=1, keepdims=True)
        s2 = jnp.sum(z * z, axis=1, keepdims=True)
        zero = jnp.zeros_like(s1)
        stats_ref[...] += jnp.concatenate([s1, s2, zero, zero], axis=1)

    @pl.when((p == 1) & (ti == 0))
    def _finalize_stats():
        # Conv bias folded into the stats in closed form (y = z + b):
        #   col_sum(y) = col_sum(z) + N*b
        #   col_sq(y)  = col_sq(z)  + 2*b*col_sum(z) + N*b^2
        # n_total is the TRUE (unpadded) pixel count; zero-padded columns of x
        # contribute exactly 0 to col_sum/col_sq, so the stats stay exact.
        n = jnp.float32(n_total)
        bias = b_ref[...]
        st = stats_ref[...]
        s1z = st[:, 0:1]
        s2z = st[:, 1:2]
        s1 = s1z + n * bias
        s2 = s2z + 2.0 * bias * s1z + n * bias * bias

        mcg = mcg_ref[...]                                       # (Ch, G)
        denom = jnp.float32(n_total * cg)
        g_mean = jnp.sum(s1 * mcg, axis=0, keepdims=True) / denom    # (1, G)
        g_ex2 = jnp.sum(s2 * mcg, axis=0, keepdims=True) / denom     # (1, G)
        g_var = jnp.maximum(g_ex2 - g_mean * g_mean, 0.0)             # clamp >= 0
        g_inv = lax.rsqrt(g_var + eps)                                # (1, G)

        mean_c = jnp.sum(mcg * g_mean, axis=1, keepdims=True)         # (Ch, 1)
        inv_c = jnp.sum(mcg * g_inv, axis=1, keepdims=True)           # (Ch, 1)

        gamma = gamma_ref[...]
        scale = gamma * inv_c
        shift = (bias - mean_c) * inv_c * gamma + beta_ref[...]
        stats_ref[...] = jnp.concatenate([s1z, s2z, scale, shift], axis=1)

    @pl.when(p == 1)
    def _normalize():
        st = stats_ref[...]
        o_ref[0] = (z * st[:, 2:3] + st[:, 3:4]).astype(o_ref.dtype)


# --------------------------------------------------------------------------
# VMEM-budget-aware tiling
# --------------------------------------------------------------------------
def _round_up(v, m):
    return -(-v // m) * m


def _vmem_budget():
    """Per-call VMEM budget: physical capacity minus headroom for compiler scratch.

    ~48 MiB on v7x (64 MiB/TC), ~112 MiB on v5e/v6e (128 MiB).
    """
    cap = 64 * 2 ** 20
    try:
        info = pltpu.get_tpu_info()
        cap = int(getattr(info, "vmem_capacity_bytes", cap) or cap)
    except Exception:                       # non-TPU backend / interpret mode
        pass
    return max(16 * 2 ** 20, cap - 16 * 2 ** 20)


def _vmem_estimate(cin, ch, num_groups, tn, x_isz, out_isz):
    """Rough per-kernel VMEM footprint (double-buffered blocks + small operands)."""
    del num_groups
    lane = 128
    cin_s = _round_up(cin, 8)
    ch_s = _round_up(ch, 8)
    return (2 * cin_s * tn * x_isz                      # x tile (double buffered)
            + 2 * ch_s * tn * out_isz                   # out tile (double buffered)
            + 2 * ch_s * _round_up(max(cin, 1), lane) * x_isz   # weight
            + 3 * 2 * ch_s * lane * 4                   # b / gamma / beta (Ch,1) f32
            + 2 * ch_s * lane * 4                       # mcg (Ch,G) f32
            + ch_s * lane * 4                           # (Ch,4) stats scratch
            + (2 << 20))                                # compiler slack


def _select_tiling(n, cin, ch, num_groups, x_isz, out_isz, budget, max_tile_n=None):
    """Choose (tile_n, padded_n): 128-lane-dense tiles bounded by the VMEM budget.

    Prefers a single N tile (x is then not re-fetched between the stats and
    normalize passes); otherwise balances tiles so padding is at most one tile.
    """
    n128 = _round_up(n, 128)
    fixed = _vmem_estimate(cin, ch, num_groups, 0, x_isz, out_isz)
    per_col = _vmem_estimate(cin, ch, num_groups, 1, x_isz, out_isz) - fixed
    if budget > fixed + 128 * per_col:
        tn_fit = ((budget - fixed) // per_col // 128) * 128
    else:
        tn_fit = 128
    tn_max = int(min(n128, tn_fit))
    if max_tile_n is not None:
        tn_max = min(tn_max, max(128, (int(max_tile_n) // 128) * 128))
    if tn_max >= n128:
        return n128, n128                               # single N tile
    n_tiles = -(-n128 // tn_max)
    tn = _round_up(-(-n128 // n_tiles), 128)
    return int(tn), int(tn * n_tiles)


# --------------------------------------------------------------------------
# Wrapper: fused Conv2d(k=1) + GroupNorm(32)
# --------------------------------------------------------------------------
def input_proj_groupnorm(x_nchw, w, b, gamma, beta, *,
                         num_groups=NUM_GROUPS, eps=GN_EPS,
                         compute_dtype=jnp.bfloat16, out_dtype=jnp.bfloat16,
                         max_tile_n=None):
    """Fused Conv2d(kernel_size=1) + GroupNorm(num_groups) on TPU.

    x_nchw: (B, Cin, H, W);  w: (Ch, Cin) (PyTorch conv weight, squeezed);
    b / gamma / beta: (Ch,).
    Returns (B, Ch, H*W) channels-first (one free reshape away from NCHW).
    compute_dtype=bf16 feeds the MXU in bf16; the matmul accumulates in f32 and
    the GroupNorm stats / affine stay f32.  N is zero-padded to 128-lane-dense
    tiles inside the wrapper and the padded columns are sliced off the output.
    """
    bsz, cin, h, wd = x_nchw.shape
    ch, cin_w = w.shape
    assert cin_w == cin, "weight must be (hidden_dim, Cin)"
    assert ch % num_groups == 0, "hidden_dim must be divisible by num_groups"
    n = h * wd

    x_dtype = compute_dtype if compute_dtype is not None else x_nchw.dtype
    x_isz = jnp.dtype(x_dtype).itemsize
    out_isz = jnp.dtype(out_dtype).itemsize

    budget = _vmem_budget()
    tn, n_pad = _select_tiling(n, cin, ch, num_groups, x_isz, out_isz, budget,
                               max_tile_n=max_tile_n)
    n_tiles = n_pad // tn

    x = x_nchw.reshape(bsz, cin, n)              # free reshape: stay channels-first
    if compute_dtype is not None:
        x = x.astype(compute_dtype)
        w = w.astype(compute_dtype)
    if n_pad != n:
        # Zero columns contribute exactly 0 to col_sum / col_sq -> stats stay exact.
        x = jnp.pad(x, ((0, 0), (0, 0), (0, n_pad - n)))
    # TODO(synk): pad Cin to a multiple of the MXU contraction tile if a backbone
    # level ever has a ragged channel count (all realistic levels are 2^k).

    b_col = b.reshape(ch, 1).astype(jnp.float32)
    g_col = gamma.reshape(ch, 1).astype(jnp.float32)
    be_col = beta.reshape(ch, 1).astype(jnp.float32)

    # Group-membership matrix, hoisted out of the kernel (grid-invariant).
    cg = ch // num_groups
    grp_of_ch = jnp.arange(ch, dtype=jnp.int32) // cg
    mcg = (grp_of_ch[:, None] == jnp.arange(num_groups, dtype=jnp.int32)[None, :]
           ).astype(jnp.float32)                                     # (Ch, G)

    est = _vmem_estimate(cin, ch, num_groups, tn, x_isz, out_isz)
    vmem_limit = int(min(budget, max(8 * 2 ** 20, 2 * est)))

    cost = pl.CostEstimate(
        flops=4 * bsz * n_pad * cin * ch,            # conv matmul runs in both passes
        transcendentals=bsz * num_groups,            # rsqrt per group
        bytes_accessed=(2 * bsz * cin * n_pad * x_isz + ch * cin * x_isz
                        + bsz * ch * n_pad * out_isz + 8 * ch * 4),
    )

    kernel = functools.partial(_proj_gn_kernel, num_groups=num_groups,
                               eps=eps, n_total=n)

    # TODO(synk): on v7x with batch==1, add a "parallel" grid axis over halves of
    # whole channel-groups so both TensorCores are used on matmul-bound levels.
    # TODO(synk): on v5e, pipeline_mode=pl.Buffered(3) on the x spec can hide more
    # DMA latency for the multi-tile stats pass (VMEM is plentiful there).
    out = pl.pallas_call(
        kernel,
        out_shape=jax.ShapeDtypeStruct((bsz, ch, n_pad), out_dtype),
        grid_spec=pltpu.PrefetchScalarGridSpec(
            num_scalar_prefetch=0,
            grid=(bsz, 2, n_tiles),                  # (batch, pass, N-tile)
            in_specs=[
                pl.BlockSpec((1, cin, tn), lambda bi, p, ti: (bi, 0, ti)),
                pl.BlockSpec((ch, cin), lambda bi, p, ti: (0, 0)),
                pl.BlockSpec((ch, 1), lambda bi, p, ti: (0, 0)),
                pl.BlockSpec((ch, 1), lambda bi, p, ti: (0, 0)),
                pl.BlockSpec((ch, 1), lambda bi, p, ti: (0, 0)),
                pl.BlockSpec((ch, num_groups), lambda bi, p, ti: (0, 0)),
            ],
            # During the stats pass (p=0) the output block index is pinned to
            # tile 0, so no partially-written block is ever flushed to HBM and
            # every output block is written exactly once in the normalize pass.
            out_specs=pl.BlockSpec((1, ch, tn), lambda bi, p, ti: (bi, 0, ti * p)),
            scratch_shapes=[pltpu.VMEM((ch, 4), jnp.float32)],
        ),
        compiler_params=pltpu.CompilerParams(
            dimension_semantics=("parallel", "arbitrary", "arbitrary"),
            vmem_limit_bytes=vmem_limit),
        cost_estimate=cost,
    )(x, w, b_col, g_col, be_col, mcg)

    if n_pad != n:
        out = out[:, :, :n]
    return out                                        # (B, Ch, N) channels-first


# --------------------------------------------------------------------------
# Glue / stand-ins for the externally injected sub-modules
# --------------------------------------------------------------------------
def synthetic_backbone(x, backbone_params):
    # TODO(synk): the real backbone (e.g. a ResNet/Swin) is an injected module;
    # stand-in = strided average pooling + deterministic channel mixing (plain JAX).
    feats = []
    for stride, w_ch in backbone_params:              # w_ch: (3, C_l)
        b, c, h, wd = x.shape
        xr = x.reshape(b, c, h // stride, stride, wd // stride, stride).mean(axis=(3, 5))
        f = jax.nn.relu(jnp.einsum('bchw,cd->bdhw', xr, w_ch))
        feats.append(f)                               # NCHW
    return feats


def interp_mask_nearest(mask, size):
    # F.interpolate(mask[None].float(), size=...) default mode='nearest', then bool.
    B, H, W = mask.shape
    h, w = size
    ih = jnp.floor(jnp.arange(h, dtype=jnp.float32) * (H / h)).astype(jnp.int32)
    iw = jnp.floor(jnp.arange(w, dtype=jnp.float32) * (W / w)).astype(jnp.int32)
    return mask[:, ih][:, :, iw]


def standin_det_module(srcs_cf, masks, det_params):
    # TODO(synk): the real det_module is an external deformable-DETR-style decoder
    # (no clean single-kernel Pallas equivalent); deterministic stand-in pools the
    # Pallas-projected features onto learned queries.  It consumes the features in
    # channels-first (B, Ch, N) layout directly, so no transpose is needed.
    del masks
    queries = det_params['queries']                   # (nq, hidden)
    point_w = det_params['point_w']                   # (hidden, 2)
    memory = jnp.concatenate(srcs_cf, axis=2)         # (B, hidden, sum N)
    pooled = memory.astype(jnp.float32).mean(axis=2)  # (B, hidden)
    hs_last = pooled[:, None, :] + queries[None]      # (B, nq, hidden)
    ref_points = jax.nn.sigmoid(hs_last @ point_w)    # (B, nq, 2)
    return hs_last, ref_points


def detector_forward(x, mask, params, *, use_reg_feat=True, use_glob_feat=True,
                     compute_dtype=jnp.bfloat16, out_dtype=jnp.bfloat16,
                     max_tile_n=None):
    """Mirrors Detector.forward: x = images.tensors (NCHW), mask = images.mask."""
    feats = synthetic_backbone(x, params['backbone'])
    masks = [interp_mask_nearest(mask, f.shape[-2:]) for f in feats]

    outputs = {}
    f_last = feats[-1]
    b, c, h, w = f_last.shape
    # rearrange 'b c h w -> b (h w) c'
    outputs['gri_feat'] = jnp.transpose(f_last, (0, 2, 3, 1)).reshape(b, h * w, c)
    # repeat 'b h w -> b 1 1 (h w)'
    outputs['gri_mask'] = masks[-1].reshape(b, 1, 1, h * w)

    if use_reg_feat:
        # Fused conv1x1 + GroupNorm per level; outputs stay channels-first
        # (B, Ch, N) so no HBM transposes surround the Pallas call.
        # TODO(synk): merge the per-level pallas_calls for the tiny pyramid levels
        # (concatenate along N + scalar-prefetched per-level offsets) to amortize
        # launch / per-grid-step overhead.
        srcs = [input_proj_groupnorm(f, *params['input_proj'][l],
                                     compute_dtype=compute_dtype,
                                     out_dtype=out_dtype,
                                     max_tile_n=max_tile_n)
                for l, f in enumerate(feats)]
        hs_last, inter_ref_last = standin_det_module(srcs, masks, params['det'])
        outputs['reg_feat'] = hs_last
        outputs['reg_mask'] = jnp.zeros(
            (hs_last.shape[0], 1, 1, hs_last.shape[1]), dtype=bool)
        outputs['reg_point'] = inter_ref_last

    if use_glob_feat:
        outputs['glo_feat'] = f_last                  # NCHW, as in the reference
        outputs['glo_mask'] = masks[-1]
    return outputs


# --------------------------------------------------------------------------
# Plain-JAX reference for the fused kernel (correctness check)
# --------------------------------------------------------------------------
def reference_proj_gn(f, w, b, gamma, beta, num_groups=NUM_GROUPS, eps=GN_EPS):
    # w: (Ch, Cin), PyTorch conv1x1 weight layout
    y = jnp.einsum('bchw,dc->bdhw', f, w) + b[None, :, None, None]
    bsz, ch, h, wd = y.shape
    yg = y.reshape(bsz, num_groups, ch // num_groups, h, wd)
    mean = yg.mean(axis=(2, 3, 4), keepdims=True)
    var = ((yg - mean) ** 2).mean(axis=(2, 3, 4), keepdims=True)
    yn = ((yg - mean) / jnp.sqrt(var + eps)).reshape(bsz, ch, h, wd)
    return yn * gamma[None, :, None, None] + beta[None, :, None, None]


if __name__ == "__main__":
    key = jax.random.PRNGKey(0)
    ks = jax.random.split(key, 16)

    # small shapes consistent with the module; H=W=32 gives a 16x16 (N=256)
    # feature level (divides by 128) and an 8x8 (N=64) level that exercises the
    # zero-padding path (padded to 128 lanes).
    B, C_IMG, H, W = 2, 3, 32, 32
    hidden_dim = 64                       # divisible by 32 groups (2 ch/group)
    num_channels = [8, 16]                # backbone.num_channels
    strides = [2, 4]                      # feature maps: 16x16 and 8x8

    x = jax.random.normal(ks[0], (B, C_IMG, H, W), jnp.float32)
    mask = jnp.zeros((B, H, W), dtype=bool)
    mask = mask.at[1, :, W - 8:].set(True)        # padding on sample 1

    backbone_params = [
        (strides[i],
         0.1 * jax.random.normal(ks[1 + i], (C_IMG, num_channels[i]), jnp.float32))
        for i in range(len(num_channels))
    ]
    input_proj_params = []
    for i in range(len(num_channels)):
        w = 0.1 * jax.random.normal(ks[4 + i], (hidden_dim, num_channels[i]), jnp.float32)
        bb = 0.01 * jax.random.normal(ks[6 + i], (hidden_dim,), jnp.float32)
        gamma = 1.0 + 0.1 * jax.random.normal(ks[8 + i], (hidden_dim,), jnp.float32)
        beta = 0.1 * jax.random.normal(ks[10 + i], (hidden_dim,), jnp.float32)
        input_proj_params.append((w, bb, gamma, beta))

    nq = 8
    det_params = {
        'queries': 0.1 * jax.random.normal(ks[12], (nq, hidden_dim), jnp.float32),
        'point_w': 0.1 * jax.random.normal(ks[13], (hidden_dim, 2), jnp.float32),
    }
    params = {'backbone': backbone_params,
              'input_proj': input_proj_params,
              'det': det_params}

    # Full forward with the production defaults (bf16 MXU feed, bf16 features,
    # auto VMEM-budget-aware single-tile selection).
    outputs = detector_forward(x, mask, params)
    jax.block_until_ready(outputs)

    # verify the Pallas fused conv1x1 + GroupNorm against a plain-JAX reference
    feats = synthetic_backbone(x, backbone_params)
    for l, f in enumerate(feats):
        w, bb, gamma, beta = input_proj_params[l]
        bsz, _, fh, fw = f.shape
        ref = reference_proj_gn(f, w, bb, gamma, beta)

        # f32 path, forced small tiles (exercises the multi-tile two-pass path
        # and the N zero-padding on the 8x8 level) — tight tolerance.
        got = input_proj_groupnorm(f, w, bb, gamma, beta,
                                   compute_dtype=jnp.float32,
                                   out_dtype=jnp.float32, max_tile_n=128)
        got_nchw = got.reshape(bsz, hidden_dim, fh, fw)   # free reshape (NCHW order)
        assert jnp.allclose(got_nchw, ref, atol=2e-3, rtol=2e-3), f"mismatch (f32/tiled) lvl {l}"

        # f32 path, auto tile selection (single N tile) — tight tolerance.
        got1 = input_proj_groupnorm(f, w, bb, gamma, beta,
                                    compute_dtype=jnp.float32, out_dtype=jnp.float32)
        assert jnp.allclose(got1.reshape(bsz, hidden_dim, fh, fw), ref,
                            atol=2e-3, rtol=2e-3), f"mismatch (f32/auto) lvl {l}"

        # default bf16 MXU feed + bf16 output (stats/affine stay f32) — loose tol.
        got_bf = input_proj_groupnorm(f, w, bb, gamma, beta)
        assert jnp.allclose(got_bf.astype(jnp.float32).reshape(bsz, hidden_dim, fh, fw),
                            ref, atol=1e-1, rtol=1e-1), f"mismatch (bf16) lvl {l}"

    # basic shape sanity (matches the PyTorch module's output contract)
    assert outputs['gri_feat'].shape == (B, 8 * 8, num_channels[-1])
    assert outputs['gri_mask'].shape == (B, 1, 1, 8 * 8)
    assert outputs['reg_feat'].shape == (B, nq, hidden_dim)
    assert outputs['reg_mask'].shape == (B, 1, 1, nq)
    assert outputs['reg_point'].shape == (B, nq, 2)
    assert outputs['glo_feat'].shape == (B, num_channels[-1], 8, 8)
    assert outputs['glo_mask'].shape == (B, 8, 8)

    print("KERNEL_OK")
</pallas_src>

<mosaic_0001>
module attributes {stable_mosaic.version = 11 : i64} {
  func.func @_proj_gn_kernel(%arg0: i32, %arg1: i32, %arg2: i32, %arg3: memref<1x8x256xbf16, #tpu.memory_space<vmem>>, %arg4: memref<64x8xbf16, #tpu.memory_space<vmem>>, %arg5: memref<64x1xf32, #tpu.memory_space<vmem>>, %arg6: memref<64x1xf32, #tpu.memory_space<vmem>>, %arg7: memref<64x1xf32, #tpu.memory_space<vmem>>, %arg8: memref<64x32xf32, #tpu.memory_space<vmem>>, %arg9: memref<1x64x256xbf16, #tpu.memory_space<vmem>>, %arg10: memref<64x4xf32, #tpu.memory_space<vmem>>) attributes {dimension_semantics = [#tpu.dimension_semantics<parallel>, #tpu.dimension_semantics<arbitrary>, #tpu.dimension_semantics<arbitrary>], iteration_bounds = array<i64: 2, 2, 1>, scalar_prefetch = 0 : i64, scratch_operands = 1 : i64, tpu.core_type = #tpu.core_type<tc>, window_params = [{transform_indices = @transform_0, window_bounds = array<i64: 1, 8, 256>}, {pipeline_mode = #tpu.pipeline_mode<synchronous>, transform_indices = @transform_1, window_bounds = array<i64: 64, 8>}, {pipeline_mode = #tpu.pipeline_mode<synchronous>, transform_indices = @transform_2, window_bounds = array<i64: 64, 1>}, {pipeline_mode = #tpu.pipeline_mode<synchronous>, transform_indices = @transform_3, window_bounds = array<i64: 64, 1>}, {pipeline_mode = #tpu.pipeline_mode<synchronous>, transform_indices = @transform_4, window_bounds = array<i64: 64, 1>}, {pipeline_mode = #tpu.pipeline_mode<synchronous>, transform_indices = @transform_5, window_bounds = array<i64: 64, 32>}, {transform_indices = @transform_6, window_bounds = array<i64: 1, 64, 256>}]} {
    %c0_i32 = arith.constant 0 : i32
    %0 = arith.cmpi eq, %arg1, %c0_i32 : i32
    %c0_i32_0 = arith.constant 0 : i32
    %1 = arith.cmpi eq, %arg2, %c0_i32_0 : i32
    %2 = arith.andi %0, %1 : i1
    %3 = arith.extui %2 : i1 to i32
    %c0_i32_1 = arith.constant 0 : i32
    %4 = arith.cmpi ne, %3, %c0_i32_1 : i32
    scf.if %4 {
      %cst_12 = arith.constant 0.000000e+00 : f32
      %20 = vector.broadcast %cst_12 : f32 to vector<64x4xf32>
      %c0_13 = arith.constant 0 : index
      %c0_14 = arith.constant 0 : index
      %21 = vector.load %arg10[%c0_13, %c0_14] : memref<64x4xf32, #tpu.memory_space<vmem>>, vector<64x4xf32>
      tpu.vector_store %arg10[%c0_13, %c0_14], %20 {strides = array<i32>} : memref<64x4xf32, #tpu.memory_space<vmem>>, vector<64x4xf32>,
    } else {
    }
    %c0 = arith.constant 0 : index
    %c0_2 = arith.constant 0 : index
    %5 = vector.load %arg4[%c0, %c0_2] : memref<64x8xbf16, #tpu.memory_space<vmem>>, vector<64x8xbf16>
    %c0_3 = arith.constant 0 : index
    %c0_4 = arith.constant 0 : index
    %c0_5 = arith.constant 0 : index
    %6 = vector.load %arg3[%c0_3, %c0_4, %c0_5] : memref<1x8x256xbf16, #tpu.memory_space<vmem>>, vector<1x8x256xbf16>
    %7 = vector.shape_cast %6 : vector<1x8x256xbf16> to vector<8x256xbf16>
    %cst = arith.constant dense<0.000000e+00> : vector<64x256xf32>
    %8 = tpu.matmul %5, %7, %cst {dimension_numbers = #tpu.dot_dimension_numbers<[1], [0], [0], [1], [0, 0, 1, 1], [], []>} : vector<64x8xbf16>, vector<8x256xbf16>, vector<64x256xf32> -> vector<64x256xf32>
    %c0_i32_6 = arith.constant 0 : i32
    %9 = arith.cmpi eq, %arg1, %c0_i32_6 : i32
    %10 = arith.extui %9 : i1 to i32
    %c0_i32_7 = arith.constant 0 : i32
    %11 = arith.cmpi ne, %10, %c0_i32_7 : i32
    scf.if %11 {
      %cst_12 = arith.constant dense<0.000000e+00> : vector<64xf32>
      %20 = vector.multi_reduction <add>, %8, %cst_12 [1] : vector<64x256xf32> to vector<64xf32>
      %21 = vector.shape_cast %20 : vector<64xf32> to vector<64x1xf32>
      %22 = arith.mulf %8, %8 : vector<64x256xf32>
      %cst_13 = arith.constant dense<0.000000e+00> : vector<64xf32>
      %23 = vector.multi_reduction <add>, %22, %cst_13 [1] : vector<64x256xf32> to vector<64xf32>
      %24 = vector.shape_cast %23 : vector<64xf32> to vector<64x1xf32>
      %cst_14 = arith.constant 0.000000e+00 : f32
      %25 = vector.broadcast %cst_14 : f32 to vector<64x1xf32>
      %c0_15 = arith.constant 0 : index
      %c0_16 = arith.constant 0 : index
      %26 = vector.load %arg10[%c0_15, %c0_16] : memref<64x4xf32, #tpu.memory_space<vmem>>, vector<64x4xf32>
      %27 = tpu.concatenate %21, %24, %25, %25 in 1 : vector<64x1xf32>, vector<64x1xf32>, vector<64x1xf32>, vector<64x1xf32> -> vector<64x4xf32>
      %28 = arith.addf %26, %27 : vector<64x4xf32>
      %c0_17 = arith.constant 0 : index
      %c0_18 = arith.constant 0 : index
      %29 = vector.load %arg10[%c0_17, %c0_18] : memref<64x4xf32, #tpu.memory_space<vmem>>, vector<64x4xf32>
      tpu.vector_store %arg10[%c0_17, %c0_18], %28 {strides = array<i32>} : memref<64x4xf32, #tpu.memory_space<vmem>>, vector<64x4xf32>,
    } else {
    }
    %c1_i32 = arith.constant 1 : i32
    %12 = arith.cmpi eq, %arg1, %c1_i32 : i32
    %c0_i32_8 = arith.constant 0 : i32
    %13 = arith.cmpi eq, %arg2, %c0_i32_8 : i32
    %14 = arith.andi %12, %13 : i1
    %15 = arith.extui %14 : i1 to i32
    %c0_i32_9 = arith.constant 0 : i32
    %16 = arith.cmpi ne, %15, %c0_i32_9 : i32
    scf.if %16 {
      %c0_12 = arith.constant 0 : index
      %c0_13 = arith.constant 0 : index
      %20 = vector.load %arg5[%c0_12, %c0_13] : memref<64x1xf32, #tpu.memory_space<vmem>>, vector<64x1xf32>
      %c0_14 = arith.constant 0 : index
      %c0_15 = arith.constant 0 : index
      %21 = vector.load %arg10[%c0_14, %c0_15] : memref<64x4xf32, #tpu.memory_space<vmem>>, vector<64x4xf32>
      %22 = vector.extract_strided_slice %21 {offsets = [0, 0], sizes = [64, 1], strides = [1, 1]} : vector<64x4xf32> to vector<64x1xf32>
      %23 = vector.extract_strided_slice %21 {offsets = [0, 1], sizes = [64, 1], strides = [1, 1]} : vector<64x4xf32> to vector<64x1xf32>
      %cst_16 = arith.constant 2.560000e+02 : f32
      %24 = vector.broadcast %cst_16 : f32 to vector<64x1xf32>
      %25 = arith.mulf %24, %20 : vector<64x1xf32>
      %26 = arith.addf %22, %25 : vector<64x1xf32>
      %cst_17 = arith.constant 2.000000e+00 : f32
      %27 = vector.broadcast %cst_17 : f32 to vector<64x1xf32>
      %28 = arith.mulf %27, %20 : vector<64x1xf32>
      %29 = arith.mulf %28, %22 : vector<64x1xf32>
      %30 = arith.addf %23, %29 : vector<64x1xf32>
      %cst_18 = arith.constant 2.560000e+02 : f32
      %31 = vector.broadcast %cst_18 : f32 to vector<64x1xf32>
      %32 = arith.mulf %31, %20 : vector<64x1xf32>
      %33 = arith.mulf %32, %20 : vector<64x1xf32>
      %34 = arith.addf %30, %33 : vector<64x1xf32>
      %c0_19 = arith.constant 0 : index
      %c0_20 = arith.constant 0 : index
      %35 = vector.load %arg8[%c0_19, %c0_20] : memref<64x32xf32, #tpu.memory_space<vmem>>, vector<64x32xf32>
      %36 = vector.broadcast %26 : vector<64x1xf32> to vector<64x32xf32>
      %37 = arith.mulf %36, %35 : vector<64x32xf32>
      %cst_21 = arith.constant dense<0.000000e+00> : vector<32xf32>
      %38 = vector.multi_reduction <add>, %37, %cst_21 [0] : vector<64x32xf32> to vector<32xf32>
      %39 = vector.shape_cast %38 : vector<32xf32> to vector<1x32xf32>
      %cst_22 = arith.constant 5.120000e+02 : f32
      %40 = vector.broadcast %cst_22 : f32 to vector<1x32xf32>
      %41 = arith.divf %39, %40 : vector<1x32xf32>
      %42 = vector.broadcast %34 : vector<64x1xf32> to vector<64x32xf32>
      %43 = arith.mulf %42, %35 : vector<64x32xf32>
      %cst_23 = arith.constant dense<0.000000e+00> : vector<32xf32>
      %44 = vector.multi_reduction <add>, %43, %cst_23 [0] : vector<64x32xf32> to vector<32xf32>
      %45 = vector.shape_cast %44 : vector<32xf32> to vector<1x32xf32>
      %cst_24 = arith.constant 5.120000e+02 : f32
      %46 = vector.broadcast %cst_24 : f32 to vector<1x32xf32>
      %47 = arith.divf %45, %46 : vector<1x32xf32>
      %48 = arith.mulf %41, %41 : vector<1x32xf32>
      %49 = arith.subf %47, %48 : vector<1x32xf32>
      %cst_25 = arith.constant 0.000000e+00 : f32
      %50 = vector.broadcast %cst_25 : f32 to vector<1x32xf32>
      %51 = arith.maximumf %49, %50 : vector<1x32xf32>
      %cst_26 = arith.constant 9.99999974E-6 : f32
      %52 = vector.broadcast %cst_26 : f32 to vector<1x32xf32>
      %53 = arith.addf %51, %52 : vector<1x32xf32>
      %54 = math.rsqrt %53 : vector<1x32xf32>
      %55 = vector.broadcast %41 : vector<1x32xf32> to vector<64x32xf32>
      %56 = arith.mulf %35, %55 : vector<64x32xf32>
      %cst_27 = arith.constant dense<0.000000e+00> : vector<64xf32>
      %57 = vector.multi_reduction <add>, %56, %cst_27 [1] : vector<64x32xf32> to vector<64xf32>
      %58 = vector.shape_cast %57 : vector<64xf32> to vector<64x1xf32>
      %59 = vector.broadcast %54 : vector<1x32xf32> to vector<64x32xf32>
      %60 = arith.mulf %35, %59 : vector<64x32xf32>
      %cst_28 = arith.constant dense<0.000000e+00> : vector<64xf32>
      %61 = vector.multi_reduction <add>, %60, %cst_28 [1] : vector<64x32xf32> to vector<64xf32>
      %62 = vector.shape_cast %61 : vector<64xf32> to vector<64x1xf32>
      %c0_29 = arith.constant 0 : index
      %c0_30 = arith.constant 0 : index
      %63 = vector.load %arg6[%c0_29, %c0_30] : memref<64x1xf32, #tpu.memory_space<vmem>>, vector<64x1xf32>
      %64 = arith.mulf %63, %62 : vector<64x1xf32>
      %65 = arith.subf %20, %58 : vector<64x1xf32>
      %66 = arith.mulf %65, %62 : vector<64x1xf32>
      %67 = arith.mulf %66, %63 : vector<64x1xf32>
      %c0_31 = arith.constant 0 : index
      %c0_32 = arith.constant 0 : index
      %68 = vector.load %arg7[%c0_31, %c0_32] : memref<64x1xf32, #tpu.memory_space<vmem>>, vector<64x1xf32>
      %69 = arith.addf %67, %68 : vector<64x1xf32>
      %70 = tpu.concatenate %22, %23, %64, %69 in 1 : vector<64x1xf32>, vector<64x1xf32>, vector<64x1xf32>, vector<64x1xf32> -> vector<64x4xf32>
      %c0_33 = arith.constant 0 : index
      %c0_34 = arith.constant 0 : index
      %71 = vector.load %arg10[%c0_33, %c0_34] : memref<64x4xf32, #tpu.memory_space<vmem>>, vector<64x4xf32>
      tpu.vector_store %arg10[%c0_33, %c0_34], %70 {strides = array<i32>} : memref<64x4xf32, #tpu.memory_space<vmem>>, vector<64x4xf32>,
    } else {
    }
    %c1_i32_10 = arith.constant 1 : i32
    %17 = arith.cmpi eq, %arg1, %c1_i32_10 : i32
    %18 = arith.extui %17 : i1 to i32
    %c0_i32_11 = arith.constant 0 : i32
    %19 = arith.cmpi ne, %18, %c0_i32_11 : i32
    scf.if %19 {
      %c0_12 = arith.constant 0 : index
      %c0_13 = arith.constant 0 : index
      %20 = vector.load %arg10[%c0_12, %c0_13] : memref<64x4xf32, #tpu.memory_space<vmem>>, vector<64x4xf32>
      %21 = vector.extract_strided_slice %20 {offsets = [0, 2], sizes = [64, 1], strides = [1, 1]} : vector<64x4xf32> to vector<64x1xf32>
      %22 = vector.broadcast %21 : vector<64x1xf32> to vector<64x256xf32>
      %23 = arith.mulf %8, %22 : vector<64x256xf32>
      %24 = vector.extract_strided_slice %20 {offsets = [0, 3], sizes = [64, 1], strides = [1, 1]} : vector<64x4xf32> to vector<64x1xf32>
      %25 = vector.broadcast %24 : vector<64x1xf32> to vector<64x256xf32>
      %26 = arith.addf %23, %25 : vector<64x256xf32>
      %27 = arith.truncf %26 : vector<64x256xf32> to vector<64x256xbf16>
      %c0_14 = arith.constant 0 : index
      %c0_15 = arith.constant 0 : index
      %c0_16 = arith.constant 0 : index
      %28 = vector.load %arg9[%c0_14, %c0_15, %c0_16] : memref<1x64x256xbf16, #tpu.memory_space<vmem>>, vector<1x64x256xbf16>
      %29 = vector.shape_cast %28 : vector<1x64x256xbf16> to vector<64x256xbf16>
      %30 = vector.shape_cast %27 : vector<64x256xbf16> to vector<1x64x256xbf16>
      tpu.vector_store %arg9[%c0_14, %c0_15, %c0_16], %30 {strides = array<i32>} : memref<1x64x256xbf16, #tpu.memory_space<vmem>>, vector<1x64x256xbf16>,
    } else {
    }
    return
  }
  func.func @transform_0(%arg0: i32, %arg1: i32, %arg2: i32) -> (i32, i32, i32) {
    %c0_i32 = arith.constant 0 : i32
    %c0_i32_0 = arith.constant 0 : i32
    return %arg0, %c0_i32, %arg2 : i32, i32, i32
  }
  func.func @transform_1(%arg0: i32, %arg1: i32, %arg2: i32) -> (i32, i32) {
    %c0_i32 = arith.constant 0 : i32
    %c0_i32_0 = arith.constant 0 : i32
    %c0_i32_1 = arith.constant 0 : i32
    return %c0_i32, %c0_i32_0 : i32, i32
  }
  func.func @transform_2(%arg0: i32, %arg1: i32, %arg2: i32) -> (i32, i32) {
    %c0_i32 = arith.constant 0 : i32
    %c0_i32_0 = arith.constant 0 : i32
    %c0_i32_1 = arith.constant 0 : i32
    return %c0_i32, %c0_i32_0 : i32, i32
  }
  func.func @transform_3(%arg0: i32, %arg1: i32, %arg2: i32) -> (i32, i32) {
    %c0_i32 = arith.constant 0 : i32
    %c0_i32_0 = arith.constant 0 : i32
    %c0_i32_1 = arith.constant 0 : i32
    return %c0_i32, %c0_i32_0 : i32, i32
  }
  func.func @transform_4(%arg0: i32, %arg1: i32, %arg2: i32) -> (i32, i32) {
    %c0_i32 = arith.constant 0 : i32
    %c0_i32_0 = arith.constant 0 : i32
    %c0_i32_1 = arith.constant 0 : i32
    return %c0_i32, %c0_i32_0 : i32, i32
  }
  func.func @transform_5(%arg0: i32, %arg1: i32, %arg2: i32) -> (i32, i32) {
    %c0_i32 = arith.constant 0 : i32
    %c0_i32_0 = arith.constant 0 : i32
    %c0_i32_1 = arith.constant 0 : i32
    return %c0_i32, %c0_i32_0 : i32, i32
  }
  func.func @transform_6(%arg0: i32, %arg1: i32, %arg2: i32) -> (i32, i32, i32) {
    %0 = arith.muli %arg2, %arg1 : i32
    %c0_i32 = arith.constant 0 : i32
    %c0_i32_0 = arith.constant 0 : i32
    return %arg0, %c0_i32, %0 : i32, i32, i32
  }
}

</mosaic_0001>

<llo_original>
// kernel: tpu_custom_call.1
$region0: #{tpu_custom_call.1}
  #allocation0 [shape = 'u32[]', space=smem, size = 0x4, offset = 0x4, fixed_abs, tag = 'smem constant byte address 0x4 - core index']
  #allocation1 [shape = 'u32[144,128]{1,0:T(1,128)}', space=vmem, size = 0x12000, scoped, tag = 'internal scratch']
  #allocation2 [shape = 'f32[64,4]{1,0:T(8,128)}', space=vmem, size = 0x8000, scoped, tag = 'scratch operand']
  %s0 = inlined_call_operand.vmem [shape: bf16[2,8,256], index: 0, kind: input, shape index: {}]
  %s1 = inlined_call_operand.vmem [shape: bf16[64,8], index: 1, kind: input, shape index: {}]
  %s2 = inlined_call_operand.vmem [shape: f32[64,1], index: 2, kind: input, shape index: {}]
  %s3 = inlined_call_operand.vmem [shape: f32[64,1], index: 3, kind: input, shape index: {}]
  %s4 = inlined_call_operand.vmem [shape: f32[64,1], index: 4, kind: input, shape index: {}]
  %s5 = inlined_call_operand.vmem [shape: f32[64,32], index: 5, kind: input, shape index: {}]
  %s6 = inlined_call_operand.hbm [shape: bf16[2,64,256], index: 6, kind: output, shape index: {}]
  %s7 = sld [smem:[#allocation0]]
  $region73: #{tpu_custom_call.1} parent=0
    _
  %s9 = ssub.s32 1, %s7
  %s10 = scalar_select 0, %s9, %s7
  $region1: #{tpu_custom_call.1} parent=0
    #allocation3 [shape = 'u8[65536]{0}', space=vmem, size = 0x10000, scoped, tag = 'output window, operand 0']
    #allocation4 [shape = 's32[2]{0}', space=sflag, size = 0x8, scoped, tag = 'scoped memory for tpu_custom_call.1']
    %11 = vsyncpa [#allocation4], 0
    %s12 = scalar_lea.sflag [#allocation4], 1
    %13 = vsyncpa %s12, 0
    loop: start=0, step=1, limit=6
    $region2: #{tpu_custom_call.1} parent=1 // loop_pre_header
      _
    $region3: #{tpu_custom_call.1} parent=1 // loop_header
      %s15 = sphi 0, %s19
      %p16 = scmp.ge.s32.totalorder %s15, 6
      %s22 = sphi 0, %s41
      %s23 = sphi 0, %s37
      %s24 = sphi 0, %s33
      %s25 = sphi 0, %s22
      %s26 = sphi 0, %s23
      %s27 = sphi 0, %s24
      %s28 = sphi 0, %s25
      %s29 = sphi 0, %s26
      %s30 = sphi 0, %s27
      %s46 = sphi 0, %s48
      %s49 = sphi 0, %s46
      %s50 = sphi 0, %s49
      %s66 = sphi 0, %s50
      %s70 = sphi 0, %s70
      %s72 = sphi 0, %s70
      %s73 = sphi 0, %s72
      %s87 = sphi 0, %s73
      %s91 = sphi 0, %s91
      %s93 = sphi 0, %s91
      %s94 = sphi 0, %s93
      %s108 = sphi 0, %s94
      %s112 = sphi 0, %s112
      %s114 = sphi 0, %s112
      %s115 = sphi 0, %s114
      %s129 = sphi 0, %s115
      %s133 = sphi 0, %s133
      %s135 = sphi 0, %s133
      %s136 = sphi 0, %s135
      %s150 = sphi 0, %s136
      %s154 = sphi 0, %s154
      %s156 = sphi 0, %s154
      %s157 = sphi 0, %s156
      %s171 = sphi 0, %s157
      %s181 = sphi 0, %s183
      %s184 = sphi 0, %s181
      %s185 = sphi 0, %s184
      %s201 = sphi 0, %s185
    $region4: #{tpu_custom_call.1} parent=1 // loop_header_branch
      %18 = sbr.rel (%p16) target = $region8
    $region5: #{tpu_custom_call.1} parent=1 // loop_body
      %s20 = ssub.s32 %s15, 1
      %s21 = ssub.s32 %s15, 2
      %s31 = sadd.s32 1, %s24
      %p32 = scmp.ge.s32.totalorder %s31, 1
      %s33 = scalar_select %p32, 0, %s31
      %s34 = sadd.s32 1, %s23
      %s35 = scalar_select %p32, %s34, %s23
      %p36 = scmp.ge.s32.totalorder %s35, 2
      %s37 = scalar_select %p36, 0, %s35
      %s38 = sadd.s32 1, %s22
      %s39 = scalar_select %p36, %s38, %s22
      %p40 = scmp.ge.s32.totalorder %s39, 2
      %s41 = scalar_select %p40, 0, %s39
      %s42 = ssub.s32 %s22, %s41
      %s43 = ssub.s32 %s24, %s33
      %s44 = sor.u32 %s42, %s43
      %p45 = scmp.eq.s32.totalorder %s44, 0
      %s47 = sadd.s32 %s46, 1
      %s48 = scalar_select %p45, %s46, %s47
      %p51 = pneg %p45
      %p52 = scmp.eq.s32.totalorder %s15, 3
      %p53 = por %p51, %p52
      %p54 = scmp.ne.s32.totalorder %s46, %s49
      %p55 = scmp.eq.s32.totalorder %s15, 0
      %p56 = por %p54, %p55
      %p57 = scmp.ne.s32.totalorder %s46, %s49
      %p58 = scmp.eq.s32.totalorder %s20, 3
      %p59 = por %p57, %p58
      %p60 = scmp.ne.s32.totalorder %s49, %s50
      %p61 = scmp.eq.s32.totalorder %s20, 0
      %p62 = por %p60, %p61
      %p63 = scmp.ne.s32.totalorder %s49, %s50
      %p64 = scmp.eq.s32.totalorder %s21, 3
      %p65 = por %p63, %p64
      %p67 = scmp.ne.s32.totalorder %s50, %s66
      %p68 = scmp.eq.s32.totalorder %s21, 0
      %p69 = por %p67, %p68
      %s71 = sadd.s32 %s70, 1
      %p74 = scmp.eq.s32.totalorder %s15, 3
      %p75 = scmp.ne.s32.totalorder %s70, %s72
      %p76 = scmp.eq.s32.totalorder %s15, 0
      %p77 = por %p75, %p76
      %p78 = scmp.ne.s32.totalorder %s70, %s72
      %p79 = scmp.eq.s32.totalorder %s20, 3
      %p80 = por %p78, %p79
      %p81 = scmp.ne.s32.totalorder %s72, %s73
      %p82 = scmp.eq.s32.totalorder %s20, 0
      %p83 = por %p81, %p82
      %p84 = scmp.ne.s32.totalorder %s72, %s73
      %p85 = scmp.eq.s32.totalorder %s21, 3
      %p86 = por %p84, %p85
      %p88 = scmp.ne.s32.totalorder %s73, %s87
      %p89 = scmp.eq.s32.totalorder %s21, 0
      %p90 = por %p88, %p89
      %s92 = sadd.s32 %s91, 1
      %p95 = scmp.eq.s32.totalorder %s15, 3
      %p96 = scmp.ne.s32.totalorder %s91, %s93
      %p97 = scmp.eq.s32.totalorder %s15, 0
      %p98 = por %p96, %p97
      %p99 = scmp.ne.s32.totalorder %s91, %s93
      %p100 = scmp.eq.s32.totalorder %s20, 3
      %p101 = por %p99, %p100
      %p102 = scmp.ne.s32.totalorder %s93, %s94
      %p103 = scmp.eq.s32.totalorder %s20, 0
      %p104 = por %p102, %p103
      %p105 = scmp.ne.s32.totalorder %s93, %s94
      %p106 = scmp.eq.s32.totalorder %s21, 3
      %p107 = por %p105, %p106
      %p109 = scmp.ne.s32.totalorder %s94, %s108
      %p110 = scmp.eq.s32.totalorder %s21, 0
      %p111 = por %p109, %p110
      %s113 = sadd.s32 %s112, 1
      %p116 = scmp.eq.s32.totalorder %s15, 3
      %p117 = scmp.ne.s32.totalorder %s112, %s114
      %p118 = scmp.eq.s32.totalorder %s15, 0
      %p119 = por %p117, %p118
      %p120 = scmp.ne.s32.totalorder %s112, %s114
      %p121 = scmp.eq.s32.totalorder %s20, 3
      %p122 = por %p120, %p121
      %p123 = scmp.ne.s32.totalorder %s114, %s115
      %p124 = scmp.eq.s32.totalorder %s20, 0
      %p125 = por %p123, %p124
      %p126 = scmp.ne.s32.totalorder %s114, %s115
      %p127 = scmp.eq.s32.totalorder %s21, 3
      %p128 = por %p126, %p127
      %p130 = scmp.ne.s32.totalorder %s115, %s129
      %p131 = scmp.eq.s32.totalorder %s21, 0
      %p132 = por %p130, %p131
      %s134 = sadd.s32 %s133, 1
      %p137 = scmp.eq.s32.totalorder %s15, 3
      %p138 = scmp.ne.s32.totalorder %s133, %s135
      %p139 = scmp.eq.s32.totalorder %s15, 0
      %p140 = por %p138, %p139
      %p141 = scmp.ne.s32.totalorder %s133, %s135
      %p142 = scmp.eq.s32.totalorder %s20, 3
      %p143 = por %p141, %p142
      %p144 = scmp.ne.s32.totalorder %s135, %s136
      %p145 = scmp.eq.s32.totalorder %s20, 0
      %p146 = por %p144, %p145
      %p147 = scmp.ne.s32.totalorder %s135, %s136
      %p148 = scmp.eq.s32.totalorder %s21, 3
      %p149 = por %p147, %p148
      %p151 = scmp.ne.s32.totalorder %s136, %s150
      %p152 = scmp.eq.s32.totalorder %s21, 0
      %p153 = por %p151, %p152
      %s155 = sadd.s32 %s154, 1
      %p158 = scmp.eq.s32.totalorder %s15, 3
      %p159 = scmp.ne.s32.totalorder %s154, %s156
      %p160 = scmp.eq.s32.totalorder %s15, 0
      %p161 = por %p159, %p160
      %p162 = scmp.ne.s32.totalorder %s154, %s156
      %p163 = scmp.eq.s32.totalorder %s20, 3
      %p164 = por %p162, %p163
      %p165 = scmp.ne.s32.totalorder %s156, %s157
      %p166 = scmp.eq.s32.totalorder %s20, 0
      %p167 = por %p165, %p166
      %p168 = scmp.ne.s32.totalorder %s156, %s157
      %p169 = scmp.eq.s32.totalorder %s21, 3
      %p170 = por %p168, %p169
      %p172 = scmp.ne.s32.totalorder %s157, %s171
      %p173 = scmp.eq.s32.totalorder %s21, 0
      %p174 = por %p172, %p173
      %s175 = smul.u32 %s24, %s23
      %s176 = smul.u32 %s33, %s37
      %s177 = ssub.s32 %s22, %s41
      %s178 = ssub.s32 %s175, %s176
      %s179 = sor.u32 %s177, %s178
      %p180 = scmp.eq.s32.totalorder %s179, 0
      %s182 = sadd.s32 %s181, 1
      %s183 = scalar_select %p180, %s181, %s182
      %p186 = pneg %p180
      %p187 = scmp.eq.s32.totalorder %s15, 3
      %p188 = por %p186, %p187
      %p189 = scmp.ne.s32.totalorder %s181, %s184
      %p190 = scmp.eq.s32.totalorder %s15, 0
      %p191 = por %p189, %p190
      %p192 = scmp.ne.s32.totalorder %s181, %s184
      %p193 = scmp.eq.s32.totalorder %s20, 3
      %p194 = por %p192, %p193
      %p195 = scmp.ne.s32.totalorder %s184, %s185
      %p196 = scmp.eq.s32.totalorder %s20, 0
      %p197 = por %p195, %p196
      %p198 = scmp.ne.s32.totalorder %s184, %s185
      %p199 = scmp.eq.s32.totalorder %s21, 3
      %p200 = por %p198, %p199
      %p202 = scmp.ne.s32.totalorder %s185, %s201
      %p203 = scmp.eq.s32.totalorder %s21, 0
      %p204 = por %p202, %p203
      %p205 = scmp.le.s32.totalorder 1, %s15
      %p206 = scmp.lt.s32.totalorder %s15, 5
      %p207 = pnand %p205, %p206
      %p208 = pneg %p207
      // Predicated region
      $region9: #{tpu_custom_call.1} parent=5 // pred_check
        _
      $region10: #{tpu_custom_call.1} parent=5 // pred_check_branch
        %210 = sbr.rel (%p207) target = $region12
      $region11: #{tpu_custom_call.1} parent=5 // pred_region
        %s211 = ssub.s32 %s15, 1
        // Predicated region
        $region13: #{tpu_custom_call.1} parent=11 // pred_check
          %p212 = pneg %p83
        $region14: #{tpu_custom_call.1} parent=11 // pred_check_branch
          %214 = sbr.rel (%p212) target = $region16
        $region15: #{tpu_custom_call.1} parent=11 // pred_region
          _
        $region16: #{tpu_custom_call.1} parent=11 // pred_fallthru
          _
        // Predicated region
        $region17: #{tpu_custom_call.1} parent=11 // pred_check
          %p215 = pneg %p104
        $region18: #{tpu_custom_call.1} parent=11 // pred_check_branch
          %217 = sbr.rel (%p215) target = $region20
        $region19: #{tpu_custom_call.1} parent=11 // pred_region
          _
        $region20: #{tpu_custom_call.1} parent=11 // pred_fallthru
          _
        // Predicated region
        $region21: #{tpu_custom_call.1} parent=11 // pred_check
          %p218 = pneg %p125
        $region22: #{tpu_custom_call.1} parent=11 // pred_check_branch
          %220 = sbr.rel (%p218) target = $region24
        $region23: #{tpu_custom_call.1} parent=11 // pred_region
          _
        $region24: #{tpu_custom_call.1} parent=11 // pred_fallthru
          _
        // Predicated region
        $region25: #{tpu_custom_call.1} parent=11 // pred_check
          %p221 = pneg %p146
        $region26: #{tpu_custom_call.1} parent=11 // pred_check_branch
          %223 = sbr.rel (%p221) target = $region28
        $region27: #{tpu_custom_call.1} parent=11 // pred_region
          _
        $region28: #{tpu_custom_call.1} parent=11 // pred_fallthru
          _
        // Predicated region
        $region29: #{tpu_custom_call.1} parent=11 // pred_check
          %p224 = pneg %p167
        $region30: #{tpu_custom_call.1} parent=11 // pred_check_branch
          %226 = sbr.rel (%p224) target = $region32
        $region31: #{tpu_custom_call.1} parent=11 // pred_region
          _
        $region32: #{tpu_custom_call.1} parent=11 // pred_fallthru
          _
      $region12: #{tpu_custom_call.1} parent=5 // pred_fallthru
        _
      %p227 = scmp.lt.s32.totalorder %s15, 4
      // Predicated region
      $region33: #{tpu_custom_call.1} parent=5 // pred_check
        %p228 = pneg %p227
      $region34: #{tpu_custom_call.1} parent=5 // pred_check_branch
        %230 = sbr.rel (%p228) target = $region36
      $region35: #{tpu_custom_call.1} parent=5 // pred_region
        // Predicated region
        $region37: #{tpu_custom_call.1} parent=35 // pred_check
          %p231 = pneg %p56
        $region38: #{tpu_custom_call.1} parent=35 // pred_check_branch
          %233 = sbr.rel (%p231) target = $region40
        $region39: #{tpu_custom_call.1} parent=35 // pred_region
          %s234 = smul.u32 2, %s24
          %p235 = scmp.lt.s32.totalorder %s22, 1
          %s236 = scalar_select %p235, %s22, 1
          %p237 = scmp.lt.s32.totalorder %s234, 1
          %s238 = scalar_select %p237, %s234, 1
          %s239 = smul.addr %s236, 2
          %s240 = sadd.s32 %s238, %s239
          %s241 = smul.addr %s240, 4
          %s242 = scalar_lea.vmem %s0, %s241
          %s243 = smul.u32 2, %s24
        $region40: #{tpu_custom_call.1} parent=35 // pred_fallthru
          _
      $region36: #{tpu_custom_call.1} parent=5 // pred_fallthru
        _
      %p244 = scmp.le.s32.totalorder 1, %s15
      %p245 = scmp.lt.s32.totalorder %s15, 5
      %p246 = pnand %p244, %p245
      %p247 = pneg %p246
      // Predicated region
      $region41: #{tpu_custom_call.1} parent=5 // pred_check
        _
      $region42: #{tpu_custom_call.1} parent=5 // pred_check_branch
        %249 = sbr.rel (%p246) target = $region44
      $region43: #{tpu_custom_call.1} parent=5 // pred_region
        %s250 = ssub.s32 %s15, 1
        %s251 = smul.u32 2, %s27
        %p252 = scmp.lt.s32.totalorder %s25, 1
        %s253 = scalar_select %p252, %s25, 1
        %p254 = scmp.lt.s32.totalorder %s251, 1
        %s255 = scalar_select %p254, %s251, 1
        %s256 = smul.addr %s253, 2
        %s257 = sadd.s32 %s255, %s256
        %s258 = smul.addr %s257, 4
        %s259 = scalar_lea.vmem %s0, %s258
        %p260 = pneg %p62
        %p261 = pneg %p59
        %p262 = pneg %p83
        %p263 = pneg %p80
        %p264 = pneg %p104
        %p265 = pneg %p101
        %p266 = pneg %p125
        %p267 = pneg %p122
        %p268 = pneg %p146
        %p269 = pneg %p143
        %p270 = pneg %p167
        %p271 = pneg %p164
        %p272 = pneg %p197
        %p273 = pneg %p194
        %s274 = sand.u32 %s184, 1
        %s275 = scalar_lea.sflag [#allocation4], %s274
        %s276 = sand.u32 %s184, 1
        %s277 = smul.addr %s276, 64
        %s278 = scalar_lea.vmem [#allocation3], %s277
        %s279 = smul.u32 2, %s27
        %p280 = scmp.lt.s32.totalorder %s25, 1
        %s281 = scalar_select %p280, %s25, 1
        %p282 = scmp.lt.s32.totalorder %s279, 1
        %s283 = scalar_select %p282, %s279, 1
        %s284 = smul.addr %s281, 2
        %s285 = sadd.s32 %s283, %s284
        %s286 = smul.addr %s285, 4
        %s287 = scalar_lea.vmem %s0, %s286
        %s288 = smul.u32 2, %s27
        %s289 = smul.u32 %s27, %s26
        %s290 = smul.u32 2, %s289
        %p292 = scmp.eq.s32.totalorder %s26, 0
        %p293 = scmp.eq.s32.totalorder %s27, 0
        %p294 = pnand %p292, %p293
        %p295 = pneg %p294
        // Predicated region
        $region45: #{tpu_custom_call.1} parent=43 // pred_check
          _
        $region46: #{tpu_custom_call.1} parent=43 // pred_check_branch
          %297 = sbr.rel (%p294) target = $region48
        $region47: #{tpu_custom_call.1} parent=43 // pred_region
          %vm298 = vcmask 31744
          %299 = vst.msk [vmem:[#allocation2] sm:$0xff] %vm298, 0.0
          %300 = vst.msk [vmem:[#allocation2 + $0x8] sm:$0xff] %vm298, 0.0
          %301 = vst.msk [vmem:[#allocation2 + $0x10] sm:$0xff] %vm298, 0.0
          %302 = vst.msk [vmem:[#allocation2 + $0x18] sm:$0xff] %vm298, 0.0
          %303 = vst.msk [vmem:[#allocation2 + $0x20] sm:$0xff] %vm298, 0.0
          %304 = vst.msk [vmem:[#allocation2 + $0x28] sm:$0xff] %vm298, 0.0
          %305 = vst.msk [vmem:[#allocation2 + $0x30] sm:$0xff] %vm298, 0.0
          %306 = vst.msk [vmem:[#allocation2 + $0x38] sm:$0xff] %vm298, 0.0
        $region48: #{tpu_custom_call.1} parent=43 // pred_fallthru
          _
        %v307 = vld [vmem:[%s1] sm:$0xf]
        %v308 = vld [vmem:[%s1 + $0x4] sm:$0xf]
        %v309 = vld [vmem:[%s1 + $0x8] sm:$0xf]
        %v310 = vld [vmem:[%s1 + $0xc] sm:$0xf]
        %v311 = vld [vmem:[%s1 + $0x10] sm:$0xf]
        %v312 = vld [vmem:[%s1 + $0x14] sm:$0xf]
        %v313 = vld [vmem:[%s1 + $0x18] sm:$0xf]
        %v314 = vld [vmem:[%s1 + $0x1c] sm:$0xf]
        %v315 = vld [vmem:[%s287] sm:$0xff]
        %v324 = vunpack.c.l.b16 %v307
        %v325 = vunpack.c.l.b16 %v308
        %v326 = vunpack.c.l.b16 %v309
        %v327 = vunpack.c.l.b16 %v310
        %v328 = vunpack.c.l.b16 %v311
        %v329 = vunpack.c.l.b16 %v312
        %v330 = vunpack.c.l.b16 %v313
        %v331 = vunpack.c.l.b16 %v314
        %v332 = vpack.c.b16 %v325, %v324
        %v333 = vpack.c.b16 %v327, %v326
        %v334 = vpack.c.b16 %v329, %v328
        %v335 = vpack.c.b16 %v331, %v330
        %v337 = vunpack.c.l.b16 %v315
        %v338 = vunpack.c.h.b16 %v315
        %v339 = vpack.c.b16 %v337, %v337
        %v340 = vpack.c.b16 %v338, %v338
        %vm341 = vcmask 64512
        %v343 = vsel %vm341, %v332, 0
        %v346 = vsel %vm341, %v333, 0
        %v349 = vsel %vm341, %v334, 0
        %v352 = vsel %vm341, %v335, 0
        %vm354 = vcmask 1043456
        %v356 = vsel %vm354, %v339, 0
        %v359 = vsel %vm354, %v340, 0
        %361 = vmatprep.subr.bf16.mxu0 %v359
        %362 = vmatpush1.bf16.msra.mxu0 %v356
        %363 = vmatprep.subr.bf16.mxu0 0
        %364 = vmatpush1.bf16.msra.mxu0 0
        %365 = vmatprep.subr.bf16.mxu0 0
        %366 = vmatpush1.bf16.msra.mxu0 0
        %367 = vmatprep.subr.bf16.mxu0 0
        %368 = vmatpush1.bf16.msra.mxu0 0
        %369 = vmatprep.subr.bf16.mxu0 0
        %370 = vmatpush1.bf16.msra.mxu0 0
        %371 = vmatprep.subr.bf16.mxu0 0
        %372 = vmatpush1.bf16.msra.mxu0 0
        %373 = vmatprep.subr.bf16.mxu0 0
        %374 = vmatpush1.bf16.msra.mxu0 0
        %375 = vmatprep.subr.bf16.mxu0 0
        %376 = vmatpush1.bf16.msra.mxu0 0
        %377 = vmatprep.subr.bf16.mxu0 0
        %378 = vmatpush1.bf16.msra.mxu0 0
        %379 = vmatprep.subr.bf16.mxu0 0
        %380 = vmatpush1.bf16.msra.mxu0 0
        %381 = vmatprep.subr.bf16.mxu0 0
        %382 = vmatpush1.bf16.msra.mxu0 0
        %383 = vmatprep.subr.bf16.mxu0 0
        %384 = vmatpush1.bf16.msra.mxu0 0
        %385 = vmatprep.subr.bf16.mxu0 0
        %386 = vmatpush1.bf16.msra.mxu0 0
        %387 = vmatprep.subr.bf16.mxu0 0
        %388 = vmatpush1.bf16.msra.mxu0 0
        %389 = vmatprep.subr.bf16.mxu0 0
        %390 = vmatpush1.bf16.msra.mxu0 0
        %391 = vmatprep.subr.bf16.mxu0 0
        %392 = vmatpush1.bf16.msra.mxu0 0
        %393 = vmatprep.mubr.bf16.mxu0 0
        %394 = vmatmul.mubr.bf16.gmra.mrb[0].mxu0 %v343
        %v395 = vpop.f32.mrb[0].mxu0
        %v396 = vadd.f32 0.0, %v395
        %v397 = vpop.f32.mrb[0].mxu0
        %v398 = vadd.f32 0.0, %v397
        %v399 = vpop.f32.mrb[0].mxu0
        %v400 = vadd.f32 0.0, %v399
        %v401 = vpop.f32.mrb[0].mxu0
        %v402 = vadd.f32 0.0, %v401
        %403 = vmatprep.mubr.bf16.mxu0 0
        %404 = vmatmul.mubr.bf16.gmra.mrb[0].mxu0 %v346
        %v405 = vpop.f32.mrb[0].mxu0
        %v406 = vadd.f32 0.0, %v405
        %v407 = vpop.f32.mrb[0].mxu0
        %v408 = vadd.f32 0.0, %v407
        %v409 = vpop.f32.mrb[0].mxu0
        %v410 = vadd.f32 0.0, %v409
        %v411 = vpop.f32.mrb[0].mxu0
        %v412 = vadd.f32 0.0, %v411
        %413 = vmatprep.mubr.bf16.mxu0 0
        %414 = vmatmul.mubr.bf16.gmra.mrb[0].mxu0 %v349
        %v415 = vpop.f32.mrb[0].mxu0
        %v416 = vadd.f32 0.0, %v415
        %v417 = vpop.f32.mrb[0].mxu0
        %v418 = vadd.f32 0.0, %v417
        %v419 = vpop.f32.mrb[0].mxu0
        %v420 = vadd.f32 0.0, %v419
        %v421 = vpop.f32.mrb[0].mxu0
        %v422 = vadd.f32 0.0, %v421
        %423 = vmatprep.mubr.bf16.mxu0 0
        %424 = vmatmul.mubr.bf16.gmra.mrb[0].mxu0 %v352
        %v425 = vpop.f32.mrb[0].mxu0
        %v426 = vadd.f32 0.0, %v425
        %v427 = vpop.f32.mrb[0].mxu0
        %v428 = vadd.f32 0.0, %v427
        %v429 = vpop.f32.mrb[0].mxu0
        %v430 = vadd.f32 0.0, %v429
        %v431 = vpop.f32.mrb[0].mxu0
        %v432 = vadd.f32 0.0, %v431
        %433 = vdwg.mxu0
        // Predicated region
        $region49: #{tpu_custom_call.1} parent=43 // pred_check
          %p434 = pneg %p292
        $region50: #{tpu_custom_call.1} parent=43 // pred_check_branch
          %436 = sbr.rel (%p434) target = $region52
        $region51: #{tpu_custom_call.1} parent=43 // pred_region
          %v437 = vadd.f32 %v396, %v398
          %438 = vadd.xlane.f32.xlu0 %v437
          %v439 = vpop.xlane.xlu0 %438
          %v440 = vadd.f32 %v400, %v402
          %441 = vadd.xlane.f32.xlu0 %v440
          %v442 = vpop.xlane.xlu0 %441
          %v443 = vadd.f32 %v406, %v408
          %444 = vadd.xlane.f32.xlu0 %v443
          %v445 = vpop.xlane.xlu0 %444
          %v446 = vadd.f32 %v410, %v412
          %447 = vadd.xlane.f32.xlu0 %v446
          %v448 = vpop.xlane.xlu0 %447
          %v449 = vadd.f32 %v416, %v418
          %450 = vadd.xlane.f32.xlu0 %v449
          %v451 = vpop.xlane.xlu0 %450
          %v452 = vadd.f32 %v420, %v422
          %453 = vadd.xlane.f32.xlu0 %v452
          %v454 = vpop.xlane.xlu0 %453
          %v455 = vadd.f32 %v426, %v428
          %456 = vadd.xlane.f32.xlu0 %v455
          %v457 = vpop.xlane.xlu0 %456
          %v458 = vadd.f32 %v430, %v432
          %459 = vadd.xlane.f32.xlu0 %v458
          %v460 = vpop.xlane.xlu0 %459
          %v461 = vmul.f32 %v396, %v396
          %v462 = vmul.f32 %v398, %v398
          %v463 = vmul.f32 %v400, %v400
          %v464 = vmul.f32 %v402, %v402
          %v465 = vmul.f32 %v406, %v406
          %v466 = vmul.f32 %v408, %v408
          %v467 = vmul.f32 %v410, %v410
          %v468 = vmul.f32 %v412, %v412
          %v469 = vmul.f32 %v416, %v416
          %v470 = vmul.f32 %v418, %v418
          %v471 = vmul.f32 %v420, %v420
          %v472 = vmul.f32 %v422, %v422
          %v473 = vmul.f32 %v426, %v426
          %v474 = vmul.f32 %v428, %v428
          %v475 = vmul.f32 %v430, %v430
          %v476 = vmul.f32 %v432, %v432
          %v477 = vadd.f32 %v461, %v462
          %478 = vadd.xlane.f32.xlu0 %v477
          %v479 = vpop.xlane.xlu0 %478
          %v480 = vadd.f32 %v463, %v464
          %481 = vadd.xlane.f32.xlu0 %v480
          %v482 = vpop.xlane.xlu0 %481
          %v483 = vadd.f32 %v465, %v466
          %484 = vadd.xlane.f32.xlu0 %v483
          %v485 = vpop.xlane.xlu0 %484
          %v486 = vadd.f32 %v467, %v468
          %487 = vadd.xlane.f32.xlu0 %v486
          %v488 = vpop.xlane.xlu0 %487
          %v489 = vadd.f32 %v469, %v470
          %490 = vadd.xlane.f32.xlu0 %v489
          %v491 = vpop.xlane.xlu0 %490
          %v492 = vadd.f32 %v471, %v472
          %493 = vadd.xlane.f32.xlu0 %v492
          %v494 = vpop.xlane.xlu0 %493
          %v495 = vadd.f32 %v473, %v474
          %496 = vadd.xlane.f32.xlu0 %v495
          %v497 = vpop.xlane.xlu0 %496
          %v498 = vadd.f32 %v475, %v476
          %499 = vadd.xlane.f32.xlu0 %v498
          %v500 = vpop.xlane.xlu0 %499
          %v501 = vld [vmem:[#allocation2] sm:$0xff]
          %v502 = vld [vmem:[#allocation2 + $0x8] sm:$0xff]
          %v503 = vld [vmem:[#allocation2 + $0x10] sm:$0xff]
          %v504 = vld [vmem:[#allocation2 + $0x18] sm:$0xff]
          %v505 = vld [vmem:[#allocation2 + $0x20] sm:$0xff]
          %v506 = vld [vmem:[#allocation2 + $0x28] sm:$0xff]
          %v507 = vld [vmem:[#allocation2 + $0x30] sm:$0xff]
          %v508 = vld [vmem:[#allocation2 + $0x38] sm:$0xff]
          %vm509 = vcmask 7168
          %v510 = vsel %vm509, %v439, %v479
          %v511 = vsel %vm509, %v442, %v482
          %v512 = vsel %vm509, %v445, %v485
          %v513 = vsel %vm509, %v448, %v488
          %v514 = vsel %vm509, %v451, %v491
          %v515 = vsel %vm509, %v454, %v494
          %v516 = vsel %vm509, %v457, %v497
          %v517 = vsel %vm509, %v460, %v500
          %vm518 = vcmask 15360
          %v519 = vsel %vm518, %v510, 0.0
          %v520 = vsel %vm518, %v511, 0.0
          %v521 = vsel %vm518, %v512, 0.0
          %v522 = vsel %vm518, %v513, 0.0
          %v523 = vsel %vm518, %v514, 0.0
          %v524 = vsel %vm518, %v515, 0.0
          %v525 = vsel %vm518, %v516, 0.0
          %v526 = vsel %vm518, %v517, 0.0
          %vm527 = vcmask 23552
          %v528 = vsel %vm527, %v519, 0.0
          %v529 = vsel %vm527, %v520, 0.0
          %v530 = vsel %vm527, %v521, 0.0
          %v531 = vsel %vm527, %v522, 0.0
          %v532 = vsel %vm527, %v523, 0.0
          %v533 = vsel %vm527, %v524, 0.0
          %v534 = vsel %vm527, %v525, 0.0
          %v535 = vsel %vm527, %v526, 0.0
          %v536 = vadd.f32 %v501, %v528
          %v537 = vadd.f32 %v502, %v529
          %v538 = vadd.f32 %v503, %v530
          %v539 = vadd.f32 %v504, %v531
          %v540 = vadd.f32 %v505, %v532
          %v541 = vadd.f32 %v506, %v533
          %v542 = vadd.f32 %v507, %v534
          %v543 = vadd.f32 %v508, %v535
          %vm544 = vcmask 31744
          %545 = vst.msk [vmem:[#allocation2] sm:$0xff] %vm544, %v536
          %546 = vst.msk [vmem:[#allocation2 + $0x8] sm:$0xff] %vm544, %v537
          %547 = vst.msk [vmem:[#allocation2 + $0x10] sm:$0xff] %vm544, %v538
          %548 = vst.msk [vmem:[#allocation2 + $0x18] sm:$0xff] %vm544, %v539
          %549 = vst.msk [vmem:[#allocation2 + $0x20] sm:$0xff] %vm544, %v540
          %550 = vst.msk [vmem:[#allocation2 + $0x28] sm:$0xff] %vm544, %v541
          %551 = vst.msk [vmem:[#allocation2 + $0x30] sm:$0xff] %vm544, %v542
          %552 = vst.msk [vmem:[#allocation2 + $0x38] sm:$0xff] %vm544, %v543
        $region52: #{tpu_custom_call.1} parent=43 // pred_fallthru
          _
        %p553 = scmp.eq.s32.totalorder %s26, 1
        %p554 = pnand %p553, %p293
        %p555 = pneg %p554
        // Predicated region
        $region53: #{tpu_custom_call.1} parent=43 // pred_check
          _
        $region54: #{tpu_custom_call.1} parent=43 // pred_check_branch
          %557 = sbr.rel (%p554) target = $region56
        $region55: #{tpu_custom_call.1} parent=43 // pred_region
          %v558 = vld [vmem:[%s2] sm:$0xff]
          %v559 = vld [vmem:[%s2 + $0x8] sm:$0xff]
          %v560 = vld [vmem:[%s2 + $0x10] sm:$0xff]
          %v561 = vld [vmem:[%s2 + $0x18] sm:$0xff]
          %v562 = vld [vmem:[%s2 + $0x20] sm:$0xff]
          %v563 = vld [vmem:[%s2 + $0x28] sm:$0xff]
          %v564 = vld [vmem:[%s2 + $0x30] sm:$0xff]
          %v565 = vld [vmem:[%s2 + $0x38] sm:$0xff]
          %v566 = vld [vmem:[#allocation2] sm:$0xff]
          %v567 = vld [vmem:[#allocation2 + $0x8] sm:$0xff]
          %v568 = vld [vmem:[#allocation2 + $0x10] sm:$0xff]
          %v569 = vld [vmem:[#allocation2 + $0x18] sm:$0xff]
          %v570 = vld [vmem:[#allocation2 + $0x20] sm:$0xff]
          %v571 = vld [vmem:[#allocation2 + $0x28] sm:$0xff]
          %v572 = vld [vmem:[#allocation2 + $0x30] sm:$0xff]
          %v573 = vld [vmem:[#allocation2 + $0x38] sm:$0xff]
          %v574 = vmul.f32 %v558, 256.0
          %v575 = vmul.f32 %v559, 256.0
          %v576 = vmul.f32 %v560, 256.0
          %v577 = vmul.f32 %v561, 256.0
          %v578 = vmul.f32 %v562, 256.0
          %v579 = vmul.f32 %v563, 256.0
          %v580 = vmul.f32 %v564, 256.0
          %v581 = vmul.f32 %v565, 256.0
          %v582 = vadd.f32 %v566, %v574
          %v583 = vadd.f32 %v567, %v575
          %v584 = vadd.f32 %v568, %v576
          %v585 = vadd.f32 %v569, %v577
          %v586 = vadd.f32 %v570, %v578
          %v587 = vadd.f32 %v571, %v579
          %v588 = vadd.f32 %v572, %v580
          %v589 = vadd.f32 %v573, %v581
          %v590 = vmul.f32 %v558, 2.0
          %v591 = vmul.f32 %v559, 2.0
          %v592 = vmul.f32 %v560, 2.0
          %v593 = vmul.f32 %v561, 2.0
          %v594 = vmul.f32 %v562, 2.0
          %v595 = vmul.f32 %v563, 2.0
          %v596 = vmul.f32 %v564, 2.0
          %v597 = vmul.f32 %v565, 2.0
          %v598 = vmul.f32 %v590, %v566
          %v599 = vmul.f32 %v591, %v567
          %v600 = vmul.f32 %v592, %v568
          %v601 = vmul.f32 %v593, %v569
          %v602 = vmul.f32 %v594, %v570
          %v603 = vmul.f32 %v595, %v571
          %v604 = vmul.f32 %v596, %v572
          %v605 = vmul.f32 %v597, %v573
          %614 = vrot.lane.b32.xlu0 %v598, 1
          %v615 = vpop.permute.xlu0 %614
          %616 = vrot.lane.b32.xlu0 %v599, 1
          %v617 = vpop.permute.xlu0 %616
          %618 = vrot.lane.b32.xlu0 %v600, 1
          %v619 = vpop.permute.xlu0 %618
          %620 = vrot.lane.b32.xlu0 %v601, 1
          %v621 = vpop.permute.xlu0 %620
          %622 = vrot.lane.b32.xlu0 %v602, 1
          %v623 = vpop.permute.xlu0 %622
          %624 = vrot.lane.b32.xlu0 %v603, 1
          %v625 = vpop.permute.xlu0 %624
          %626 = vrot.lane.b32.xlu0 %v604, 1
          %v627 = vpop.permute.xlu0 %626
          %628 = vrot.lane.b32.xlu0 %v605, 1
          %v629 = vpop.permute.xlu0 %628
          %v638 = vadd.f32 %v566, %v615
          %v639 = vadd.f32 %v567, %v617
          %v640 = vadd.f32 %v568, %v619
          %v641 = vadd.f32 %v569, %v621
          %v642 = vadd.f32 %v570, %v623
          %v643 = vadd.f32 %v571, %v625
          %v644 = vadd.f32 %v572, %v627
          %v645 = vadd.f32 %v573, %v629
          %v646 = vmul.f32 %v574, %v558
          %v647 = vmul.f32 %v575, %v559
          %v648 = vmul.f32 %v576, %v560
          %v649 = vmul.f32 %v577, %v561
          %v650 = vmul.f32 %v578, %v562
          %v651 = vmul.f32 %v579, %v563
          %v652 = vmul.f32 %v580, %v564
          %v653 = vmul.f32 %v581, %v565
          %662 = vrot.lane.b32.xlu0 %v646, 1
          %v663 = vpop.permute.xlu0 %662
          %664 = vrot.lane.b32.xlu0 %v647, 1
          %v665 = vpop.permute.xlu0 %664
          %666 = vrot.lane.b32.xlu0 %v648, 1
          %v667 = vpop.permute.xlu0 %666
          %668 = vrot.lane.b32.xlu0 %v649, 1
          %v669 = vpop.permute.xlu0 %668
          %670 = vrot.lane.b32.xlu0 %v650, 1
          %v671 = vpop.permute.xlu0 %670
          %672 = vrot.lane.b32.xlu0 %v651, 1
          %v673 = vpop.permute.xlu0 %672
          %674 = vrot.lane.b32.xlu0 %v652, 1
          %v675 = vpop.permute.xlu0 %674
          %676 = vrot.lane.b32.xlu0 %v653, 1
          %v677 = vpop.permute.xlu0 %676
          %v686 = vadd.f32 %v638, %v663
          %v687 = vadd.f32 %v639, %v665
          %v688 = vadd.f32 %v640, %v667
          %v689 = vadd.f32 %v641, %v669
          %v690 = vadd.f32 %v642, %v671
          %v691 = vadd.f32 %v643, %v673
          %v692 = vadd.f32 %v644, %v675
          %v693 = vadd.f32 %v645, %v677
          %v694 = vld [vmem:[%s5] sm:$0xff]
          %v695 = vld [vmem:[%s5 + $0x8] sm:$0xff]
          %v696 = vld [vmem:[%s5 + $0x10] sm:$0xff]
          %v697 = vld [vmem:[%s5 + $0x18] sm:$0xff]
          %v698 = vld [vmem:[%s5 + $0x20] sm:$0xff]
          %v699 = vld [vmem:[%s5 + $0x28] sm:$0xff]
          %v700 = vld [vmem:[%s5 + $0x30] sm:$0xff]
          %v701 = vld [vmem:[%s5 + $0x38] sm:$0xff]
          %703 = vset.pattern.permute.xlu0 0
          %704 = vperm.xlu0 %703, %v582
          %v705 = vpop.permute.xlu0 %704
          %708 = vset.pattern.permute.xlu0 0
          %709 = vperm.xlu0 %708, %v583
          %v710 = vpop.permute.xlu0 %709
          %713 = vset.pattern.permute.xlu0 0
          %714 = vperm.xlu0 %713, %v584
          %v715 = vpop.permute.xlu0 %714
          %718 = vset.pattern.permute.xlu0 0
          %719 = vperm.xlu0 %718, %v585
          %v720 = vpop.permute.xlu0 %719
          %723 = vset.pattern.permute.xlu0 0
          %724 = vperm.xlu0 %723, %v586
          %v725 = vpop.permute.xlu0 %724
          %728 = vset.pattern.permute.xlu0 0
          %729 = vperm.xlu0 %728, %v587
          %v730 = vpop.permute.xlu0 %729
          %733 = vset.pattern.permute.xlu0 0
          %734 = vperm.xlu0 %733, %v588
          %v735 = vpop.permute.xlu0 %734
          %738 = vset.pattern.permute.xlu0 0
          %739 = vperm.xlu0 %738, %v589
          %v740 = vpop.permute.xlu0 %739
          %v742 = vmul.f32 %v705, %v694
          %v743 = vmul.f32 %v710, %v695
          %v744 = vmul.f32 %v715, %v696
          %v745 = vmul.f32 %v720, %v697
          %v746 = vmul.f32 %v725, %v698
          %v747 = vmul.f32 %v730, %v699
          %v748 = vmul.f32 %v735, %v700
          %v749 = vmul.f32 %v740, %v701
          %vm750 = vcmask 261120
          %v751 = vsel %vm750, %v742, 0.0
          %v752 = vsel %vm750, %v743, 0.0
          %v753 = vadd.f32 %v751, %v752
          %v754 = vsel %vm750, %v744, 0.0
          %v755 = vadd.f32 %v753, %v754
          %v756 = vsel %vm750, %v745, 0.0
          %v757 = vadd.f32 %v755, %v756
          %v758 = vsel %vm750, %v746, 0.0
          %v759 = vadd.f32 %v757, %v758
          %v760 = vsel %vm750, %v747, 0.0
          %v761 = vadd.f32 %v759, %v760
          %v762 = vsel %vm750, %v748, 0.0
          %v763 = vadd.f32 %v761, %v762
          %v764 = vsel %vm750, %v749, 0.0
          %v765 = vadd.f32 %v763, %v764
          %v766 = vrot.slane %v765, 4
          %v767 = vadd.f32 %v765, %v766
          %v768 = vrot.slane %v767, 2
          %v769 = vadd.f32 %v767, %v768
          %v770 = vrot.slane %v769, 1
          %v771 = vadd.f32 %v769, %v770
          %v772 = vrcp.pop 512.0
          %v773 = vmul.f32 %v771, %v772
          %775 = vset.pattern.permute.xlu0 1
          %776 = vperm.xlu0 %775, %v686
          %v777 = vpop.permute.xlu0 %776
          %780 = vset.pattern.permute.xlu0 1
          %781 = vperm.xlu0 %780, %v687
          %v782 = vpop.permute.xlu0 %781
          %785 = vset.pattern.permute.xlu0 1
          %786 = vperm.xlu0 %785, %v688
          %v787 = vpop.permute.xlu0 %786
          %790 = vset.pattern.permute.xlu0 1
          %791 = vperm.xlu0 %790, %v689
          %v792 = vpop.permute.xlu0 %791
          %795 = vset.pattern.permute.xlu0 1
          %796 = vperm.xlu0 %795, %v690
          %v797 = vpop.permute.xlu0 %796
          %800 = vset.pattern.permute.xlu0 1
          %801 = vperm.xlu0 %800, %v691
          %v802 = vpop.permute.xlu0 %801
          %805 = vset.pattern.permute.xlu0 1
          %806 = vperm.xlu0 %805, %v692
          %v807 = vpop.permute.xlu0 %806
          %810 = vset.pattern.permute.xlu0 1
          %811 = vperm.xlu0 %810, %v693
          %v812 = vpop.permute.xlu0 %811
          %v814 = vmul.f32 %v777, %v694
          %v815 = vmul.f32 %v782, %v695
          %v816 = vmul.f32 %v787, %v696
          %v817 = vmul.f32 %v792, %v697
          %v818 = vmul.f32 %v797, %v698
          %v819 = vmul.f32 %v802, %v699
          %v820 = vmul.f32 %v807, %v700
          %v821 = vmul.f32 %v812, %v701
          %v822 = vsel %vm750, %v814, 0.0
          %v823 = vsel %vm750, %v815, 0.0
          %v824 = vadd.f32 %v822, %v823
          %v825 = vsel %vm750, %v816, 0.0
          %v826 = vadd.f32 %v824, %v825
          %v827 = vsel %vm750, %v817, 0.0
          %v828 = vadd.f32 %v826, %v827
          %v829 = vsel %vm750, %v818, 0.0
          %v830 = vadd.f32 %v828, %v829
          %v831 = vsel %vm750, %v819, 0.0
          %v832 = vadd.f32 %v830, %v831
          %v833 = vsel %vm750, %v820, 0.0
          %v834 = vadd.f32 %v832, %v833
          %v835 = vsel %vm750, %v821, 0.0
          %v836 = vadd.f32 %v834, %v835
          %v837 = vrot.slane %v836, 4
          %v838 = vadd.f32 %v836, %v837
          %v839 = vrot.slane %v838, 2
          %v840 = vadd.f32 %v838, %v839
          %v841 = vrot.slane %v840, 1
          %v842 = vadd.f32 %v840, %v841
          %v843 = vmul.f32 %v842, %v772
          %v844 = vmul.f32 %v773, %v773
          %v845 = vsub.f32 %v843, %v844
          %v846 = vmax.f32 %v845, 0.0
          %v847 = vadd.f32 %v846, 1e-05
          %v848 = vrsqrt.pop %v847
          %v849 = vmul.f32 %v694, %v773
          %v850 = vmul.f32 %v695, %v773
          %v851 = vmul.f32 %v696, %v773
          %v852 = vmul.f32 %v697, %v773
          %v853 = vmul.f32 %v698, %v773
          %v854 = vmul.f32 %v699, %v773
          %v855 = vmul.f32 %v700, %v773
          %v856 = vmul.f32 %v701, %v773
          %v857 = vsel %vm750, %v849, 0.0
          %858 = vadd.xlane.f32.xlu0 %v857
          %v859 = vpop.xlane.xlu0 %858
          %v860 = vsel %vm750, %v850, 0.0
          %861 = vadd.xlane.f32.xlu0 %v860
          %v862 = vpop.xlane.xlu0 %861
          %v863 = vsel %vm750, %v851, 0.0
          %864 = vadd.xlane.f32.xlu0 %v863
          %v865 = vpop.xlane.xlu0 %864
          %v866 = vsel %vm750, %v852, 0.0
          %867 = vadd.xlane.f32.xlu0 %v866
          %v868 = vpop.xlane.xlu0 %867
          %v869 = vsel %vm750, %v853, 0.0
          %870 = vadd.xlane.f32.xlu0 %v869
          %v871 = vpop.xlane.xlu0 %870
          %v872 = vsel %vm750, %v854, 0.0
          %873 = vadd.xlane.f32.xlu0 %v872
          %v874 = vpop.xlane.xlu0 %873
          %v875 = vsel %vm750, %v855, 0.0
          %876 = vadd.xlane.f32.xlu0 %v875
          %v877 = vpop.xlane.xlu0 %876
          %v878 = vsel %vm750, %v856, 0.0
          %879 = vadd.xlane.f32.xlu0 %v878
          %v880 = vpop.xlane.xlu0 %879
          %v881 = vmul.f32 %v694, %v848
          %v882 = vmul.f32 %v695, %v848
          %v883 = vmul.f32 %v696, %v848
          %v884 = vmul.f32 %v697, %v848
          %v885 = vmul.f32 %v698, %v848
          %v886 = vmul.f32 %v699, %v848
          %v887 = vmul.f32 %v700, %v848
          %v888 = vmul.f32 %v701, %v848
          %v889 = vsel %vm750, %v881, 0.0
          %890 = vadd.xlane.f32.xlu0 %v889
          %v891 = vpop.xlane.xlu0 %890
          %v892 = vsel %vm750, %v882, 0.0
          %893 = vadd.xlane.f32.xlu0 %v892
          %v894 = vpop.xlane.xlu0 %893
          %v895 = vsel %vm750, %v883, 0.0
          %896 = vadd.xlane.f32.xlu0 %v895
          %v897 = vpop.xlane.xlu0 %896
          %v898 = vsel %vm750, %v884, 0.0
          %899 = vadd.xlane.f32.xlu0 %v898
          %v900 = vpop.xlane.xlu0 %899
          %v901 = vsel %vm750, %v885, 0.0
          %902 = vadd.xlane.f32.xlu0 %v901
          %v903 = vpop.xlane.xlu0 %902
          %v904 = vsel %vm750, %v886, 0.0
          %905 = vadd.xlane.f32.xlu0 %v904
          %v906 = vpop.xlane.xlu0 %905
          %v907 = vsel %vm750, %v887, 0.0
          %908 = vadd.xlane.f32.xlu0 %v907
          %v909 = vpop.xlane.xlu0 %908
          %v910 = vsel %vm750, %v888, 0.0
          %911 = vadd.xlane.f32.xlu0 %v910
          %v912 = vpop.xlane.xlu0 %911
          %v913 = vld [vmem:[%s3] sm:$0xff]
          %v914 = vld [vmem:[%s3 + $0x8] sm:$0xff]
          %v915 = vld [vmem:[%s3 + $0x10] sm:$0xff]
          %v916 = vld [vmem:[%s3 + $0x18] sm:$0xff]
          %v917 = vld [vmem:[%s3 + $0x20] sm:$0xff]
          %v918 = vld [vmem:[%s3 + $0x28] sm:$0xff]
          %v919 = vld [vmem:[%s3 + $0x30] sm:$0xff]
          %v920 = vld [vmem:[%s3 + $0x38] sm:$0xff]
          %v921 = vmul.f32 %v913, %v891
          %v922 = vmul.f32 %v914, %v894
          %v923 = vmul.f32 %v915, %v897
          %v924 = vmul.f32 %v916, %v900
          %v925 = vmul.f32 %v917, %v903
          %v926 = vmul.f32 %v918, %v906
          %v927 = vmul.f32 %v919, %v909
          %v928 = vmul.f32 %v920, %v912
          %v929 = vsub.f32 %v558, %v859
          %v930 = vsub.f32 %v559, %v862
          %v931 = vsub.f32 %v560, %v865
          %v932 = vsub.f32 %v561, %v868
          %v933 = vsub.f32 %v562, %v871
          %v934 = vsub.f32 %v563, %v874
          %v935 = vsub.f32 %v564, %v877
          %v936 = vsub.f32 %v565, %v880
          %v937 = vmul.f32 %v929, %v891
          %v938 = vmul.f32 %v930, %v894
          %v939 = vmul.f32 %v931, %v897
          %v940 = vmul.f32 %v932, %v900
          %v941 = vmul.f32 %v933, %v903
          %v942 = vmul.f32 %v934, %v906
          %v943 = vmul.f32 %v935, %v909
          %v944 = vmul.f32 %v936, %v912
          %v945 = vmul.f32 %v937, %v913
          %v946 = vmul.f32 %v938, %v914
          %v947 = vmul.f32 %v939, %v915
          %v948 = vmul.f32 %v940, %v916
          %v949 = vmul.f32 %v941, %v917
          %v950 = vmul.f32 %v942, %v918
          %v951 = vmul.f32 %v943, %v919
          %v952 = vmul.f32 %v944, %v920
          %v953 = vld [vmem:[%s4] sm:$0xff]
          %v954 = vld [vmem:[%s4 + $0x8] sm:$0xff]
          %v955 = vld [vmem:[%s4 + $0x10] sm:$0xff]
          %v956 = vld [vmem:[%s4 + $0x18] sm:$0xff]
          %v957 = vld [vmem:[%s4 + $0x20] sm:$0xff]
          %v958 = vld [vmem:[%s4 + $0x28] sm:$0xff]
          %v959 = vld [vmem:[%s4 + $0x30] sm:$0xff]
          %v960 = vld [vmem:[%s4 + $0x38] sm:$0xff]
          %v961 = vadd.f32 %v945, %v953
          %v962 = vadd.f32 %v946, %v954
          %v963 = vadd.f32 %v947, %v955
          %v964 = vadd.f32 %v948, %v956
          %v965 = vadd.f32 %v949, %v957
          %v966 = vadd.f32 %v950, %v958
          %v967 = vadd.f32 %v951, %v959
          %v968 = vadd.f32 %v952, %v960
          %977 = vrot.lane.b32.xlu0 %v921, 2
          %v978 = vpop.permute.xlu0 %977
          %979 = vrot.lane.b32.xlu0 %v922, 2
          %v980 = vpop.permute.xlu0 %979
          %981 = vrot.lane.b32.xlu0 %v923, 2
          %v982 = vpop.permute.xlu0 %981
          %983 = vrot.lane.b32.xlu0 %v924, 2
          %v984 = vpop.permute.xlu0 %983
          %985 = vrot.lane.b32.xlu0 %v925, 2
          %v986 = vpop.permute.xlu0 %985
          %987 = vrot.lane.b32.xlu0 %v926, 2
          %v988 = vpop.permute.xlu0 %987
          %989 = vrot.lane.b32.xlu0 %v927, 2
          %v990 = vpop.permute.xlu0 %989
          %991 = vrot.lane.b32.xlu0 %v928, 2
          %v992 = vpop.permute.xlu0 %991
          %1009 = vrot.lane.b32.xlu0 %v961, 3
          %v1010 = vpop.permute.xlu0 %1009
          %1011 = vrot.lane.b32.xlu0 %v962, 3
          %v1012 = vpop.permute.xlu0 %1011
          %1013 = vrot.lane.b32.xlu0 %v963, 3
          %v1014 = vpop.permute.xlu0 %1013
          %1015 = vrot.lane.b32.xlu0 %v964, 3
          %v1016 = vpop.permute.xlu0 %1015
          %1017 = vrot.lane.b32.xlu0 %v965, 3
          %v1018 = vpop.permute.xlu0 %1017
          %1019 = vrot.lane.b32.xlu0 %v966, 3
          %v1020 = vpop.permute.xlu0 %1019
          %1021 = vrot.lane.b32.xlu0 %v967, 3
          %v1022 = vpop.permute.xlu0 %1021
          %1023 = vrot.lane.b32.xlu0 %v968, 3
          %v1024 = vpop.permute.xlu0 %1023
          %vm1033 = vcmask 15360
          %v1034 = vsel %vm1033, %v566, %v978
          %v1035 = vsel %vm1033, %v567, %v980
          %v1036 = vsel %vm1033, %v568, %v982
          %v1037 = vsel %vm1033, %v569, %v984
          %v1038 = vsel %vm1033, %v570, %v986
          %v1039 = vsel %vm1033, %v571, %v988
          %v1040 = vsel %vm1033, %v572, %v990
          %v1041 = vsel %vm1033, %v573, %v992
          %vm1042 = vcmask 23552
          %v1043 = vsel %vm1042, %v1034, %v1010
          %v1044 = vsel %vm1042, %v1035, %v1012
          %v1045 = vsel %vm1042, %v1036, %v1014
          %v1046 = vsel %vm1042, %v1037, %v1016
          %v1047 = vsel %vm1042, %v1038, %v1018
          %v1048 = vsel %vm1042, %v1039, %v1020
          %v1049 = vsel %vm1042, %v1040, %v1022
          %v1050 = vsel %vm1042, %v1041, %v1024
          %vm1051 = vcmask 31744
          %1052 = vst.msk [vmem:[#allocation2] sm:$0xff] %vm1051, %v1043
          %1053 = vst.msk [vmem:[#allocation2 + $0x8] sm:$0xff] %vm1051, %v1044
          %1054 = vst.msk [vmem:[#allocation2 + $0x10] sm:$0xff] %vm1051, %v1045
          %1055 = vst.msk [vmem:[#allocation2 + $0x18] sm:$0xff] %vm1051, %v1046
          %1056 = vst.msk [vmem:[#allocation2 + $0x20] sm:$0xff] %vm1051, %v1047
          %1057 = vst.msk [vmem:[#allocation2 + $0x28] sm:$0xff] %vm1051, %v1048
          %1058 = vst.msk [vmem:[#allocation2 + $0x30] sm:$0xff] %vm1051, %v1049
          %1059 = vst.msk [vmem:[#allocation2 + $0x38] sm:$0xff] %vm1051, %v1050
        $region56: #{tpu_custom_call.1} parent=43 // pred_fallthru
          _
        // Predicated region
        $region57: #{tpu_custom_call.1} parent=43 // pred_check
          %p1060 = pneg %p553
        $region58: #{tpu_custom_call.1} parent=43 // pred_check_branch
          %1062 = sbr.rel (%p1060) target = $region60
        $region59: #{tpu_custom_call.1} parent=43 // pred_region
          %v1063 = vld [vmem:[#allocation2] sm:$0xff]
          %v1064 = vld [vmem:[#allocation2 + $0x8] sm:$0xff]
          %v1065 = vld [vmem:[#allocation2 + $0x10] sm:$0xff]
          %v1066 = vld [vmem:[#allocation2 + $0x18] sm:$0xff]
          %v1067 = vld [vmem:[#allocation2 + $0x20] sm:$0xff]
          %v1068 = vld [vmem:[#allocation2 + $0x28] sm:$0xff]
          %v1069 = vld [vmem:[#allocation2 + $0x30] sm:$0xff]
          %v1070 = vld [vmem:[#allocation2 + $0x38] sm:$0xff]
          %1072 = vset.pattern.permute.xlu0 2
          %1073 = vperm.xlu0 %1072, %v1063
          %v1074 = vpop.permute.xlu0 %1073
          %1077 = vset.pattern.permute.xlu0 2
          %1078 = vperm.xlu0 %1077, %v1064
          %v1079 = vpop.permute.xlu0 %1078
          %1082 = vset.pattern.permute.xlu0 2
          %1083 = vperm.xlu0 %1082, %v1065
          %v1084 = vpop.permute.xlu0 %1083
          %1087 = vset.pattern.permute.xlu0 2
          %1088 = vperm.xlu0 %1087, %v1066
          %v1089 = vpop.permute.xlu0 %1088
          %1092 = vset.pattern.permute.xlu0 2
          %1093 = vperm.xlu0 %1092, %v1067
          %v1094 = vpop.permute.xlu0 %1093
          %1097 = vset.pattern.permute.xlu0 2
          %1098 = vperm.xlu0 %1097, %v1068
          %v1099 = vpop.permute.xlu0 %1098
          %1102 = vset.pattern.permute.xlu0 2
          %1103 = vperm.xlu0 %1102, %v1069
          %v1104 = vpop.permute.xlu0 %1103
          %1107 = vset.pattern.permute.xlu0 2
          %1108 = vperm.xlu0 %1107, %v1070
          %v1109 = vpop.permute.xlu0 %1108
          %v1111 = vmul.f32 %v396, %v1074
          %v1112 = vmul.f32 %v398, %v1074
          %v1113 = vmul.f32 %v400, %v1079
          %v1114 = vmul.f32 %v402, %v1079
          %v1115 = vmul.f32 %v406, %v1084
          %v1116 = vmul.f32 %v408, %v1084
          %v1117 = vmul.f32 %v410, %v1089
          %v1118 = vmul.f32 %v412, %v1089
          %v1119 = vmul.f32 %v416, %v1094
          %v1120 = vmul.f32 %v418, %v1094
          %v1121 = vmul.f32 %v420, %v1099
          %v1122 = vmul.f32 %v422, %v1099
          %v1123 = vmul.f32 %v426, %v1104
          %v1124 = vmul.f32 %v428, %v1104
          %v1125 = vmul.f32 %v430, %v1109
          %v1126 = vmul.f32 %v432, %v1109
          %1127 = vset.pattern.permute.xlu0 3
          %1128 = vperm.xlu0 %1127, %v1063
          %v1129 = vpop.permute.xlu0 %1128
          %1131 = vset.pattern.permute.xlu0 3
          %1132 = vperm.xlu0 %1131, %v1064
          %v1133 = vpop.permute.xlu0 %1132
          %1135 = vset.pattern.permute.xlu0 3
          %1136 = vperm.xlu0 %1135, %v1065
          %v1137 = vpop.permute.xlu0 %1136
          %1139 = vset.pattern.permute.xlu0 3
          %1140 = vperm.xlu0 %1139, %v1066
          %v1141 = vpop.permute.xlu0 %1140
          %1143 = vset.pattern.permute.xlu0 3
          %1144 = vperm.xlu0 %1143, %v1067
          %v1145 = vpop.permute.xlu0 %1144
          %1147 = vset.pattern.permute.xlu0 3
          %1148 = vperm.xlu0 %1147, %v1068
          %v1149 = vpop.permute.xlu0 %1148
          %1151 = vset.pattern.permute.xlu0 3
          %1152 = vperm.xlu0 %1151, %v1069
          %v1153 = vpop.permute.xlu0 %1152
          %1155 = vset.pattern.permute.xlu0 3
          %1156 = vperm.xlu0 %1155, %v1070
          %v1157 = vpop.permute.xlu0 %1156
          %v1159 = vadd.f32 %v1111, %v1129
          %v1160 = vadd.f32 %v1112, %v1129
          %v1161 = vadd.f32 %v1113, %v1133
          %v1162 = vadd.f32 %v1114, %v1133
          %v1163 = vadd.f32 %v1115, %v1137
          %v1164 = vadd.f32 %v1116, %v1137
          %v1165 = vadd.f32 %v1117, %v1141
          %v1166 = vadd.f32 %v1118, %v1141
          %v1167 = vadd.f32 %v1119, %v1145
          %v1168 = vadd.f32 %v1120, %v1145
          %v1169 = vadd.f32 %v1121, %v1149
          %v1170 = vadd.f32 %v1122, %v1149
          %v1171 = vadd.f32 %v1123, %v1153
          %v1172 = vadd.f32 %v1124, %v1153
          %v1173 = vadd.f32 %v1125, %v1157
          %v1174 = vadd.f32 %v1126, %v1157
          %v1175 = vpack.c.bf16 %v1161, %v1159
          %v1176 = vpack.c.bf16 %v1162, %v1160
          %v1177 = vpack.c.bf16 %v1165, %v1163
          %v1178 = vpack.c.bf16 %v1166, %v1164
          %v1179 = vpack.c.bf16 %v1169, %v1167
          %v1180 = vpack.c.bf16 %v1170, %v1168
          %v1181 = vpack.c.bf16 %v1173, %v1171
          %v1182 = vpack.c.bf16 %v1174, %v1172
          %v1191 = vunpack.c.l.b16 %v1175
          %v1192 = vunpack.c.l.b16 %v1176
          %v1193 = vunpack.c.h.b16 %v1175
          %v1194 = vunpack.c.h.b16 %v1176
          %v1195 = vunpack.c.l.b16 %v1177
          %v1196 = vunpack.c.l.b16 %v1178
          %v1197 = vunpack.c.h.b16 %v1177
          %v1198 = vunpack.c.h.b16 %v1178
          %v1199 = vunpack.c.l.b16 %v1179
          %v1200 = vunpack.c.l.b16 %v1180
          %v1201 = vunpack.c.h.b16 %v1179
          %v1202 = vunpack.c.h.b16 %v1180
          %v1203 = vunpack.c.l.b16 %v1181
          %v1204 = vunpack.c.l.b16 %v1182
          %v1205 = vunpack.c.h.b16 %v1181
          %v1206 = vunpack.c.h.b16 %v1182
          %v1207 = vpack.c.b16 %v1192, %v1191
          %v1208 = vpack.c.b16 %v1194, %v1193
          %v1209 = vpack.c.b16 %v1196, %v1195
          %v1210 = vpack.c.b16 %v1198, %v1197
          %v1211 = vpack.c.b16 %v1200, %v1199
          %v1212 = vpack.c.b16 %v1202, %v1201
          %v1213 = vpack.c.b16 %v1204, %v1203
          %v1214 = vpack.c.b16 %v1206, %v1205
          %1223 = vst [vmem:[%s278] sm:$0xff] %v1207
          %1224 = vst [vmem:[%s278 + $0x8] sm:$0xff] %v1208
          %1225 = vst [vmem:[%s278 + $0x10] sm:$0xff] %v1209
          %1226 = vst [vmem:[%s278 + $0x18] sm:$0xff] %v1210
          %1227 = vst [vmem:[%s278 + $0x20] sm:$0xff] %v1211
          %1228 = vst [vmem:[%s278 + $0x28] sm:$0xff] %v1212
          %1229 = vst [vmem:[%s278 + $0x30] sm:$0xff] %v1213
          %1230 = vst [vmem:[%s278 + $0x38] sm:$0xff] %v1214
        $region60: #{tpu_custom_call.1} parent=43 // pred_fallthru
          _
        %s1231 = sand.u32 %s184, 1
        %s1232 = scalar_lea.sflag [#allocation4], %s1231
        %s1233 = sand.u32 %s184, 1
        %s1234 = smul.addr %s1233, 64
        %s1235 = scalar_lea.vmem [#allocation3], %s1234
        // Predicated region
        $region61: #{tpu_custom_call.1} parent=43 // pred_check
          %p1236 = pneg %p194
        $region62: #{tpu_custom_call.1} parent=43 // pred_check_branch
          %1238 = sbr.rel (%p1236) target = $region64
        $region63: #{tpu_custom_call.1} parent=43 // pred_region
          %s1239 = smul.u32 %s27, %s26
          %s1240 = smul.u32 2, %s1239
          %s1242 = ssub.s32 1024, 1024
          %1243 = vsyncadd %s1232, %s1242
          %s1244 = smul.addr %s25, 16
          %s1245 = sadd.s32 %s1240, %s1244
          %s1246 = smul.addr %s1245, 64
          %s1247 = scalar_lea.hbm %s6, %s1246
          %s1248 = sshll.u32 %s1235, 4
          %s1249 = int_to_ptr.vmem [resolvable:$true] %s1248
          %1254 = dma.vmem_to_hbm [thread:$0]  %s1249, 1024, %s1247, %s1232, 128, 128, 8
        $region64: #{tpu_custom_call.1} parent=43 // pred_fallthru
          _
      $region44: #{tpu_custom_call.1} parent=5 // pred_fallthru
        _
      %p1255 = scmp.le.s32.totalorder 2, %s15
      // Predicated region
      $region65: #{tpu_custom_call.1} parent=5 // pred_check
        %p1256 = pneg %p1255
      $region66: #{tpu_custom_call.1} parent=5 // pred_check_branch
        %1258 = sbr.rel (%p1256) target = $region68
      $region67: #{tpu_custom_call.1} parent=5 // pred_region
        %s1259 = ssub.s32 %s15, 2
        // Predicated region
        $region69: #{tpu_custom_call.1} parent=67 // pred_check
          %p1260 = pneg %p200
        $region70: #{tpu_custom_call.1} parent=67 // pred_check_branch
          %1262 = sbr.rel (%p1260) target = $region72
        $region71: #{tpu_custom_call.1} parent=67 // pred_region
          %s1263 = sand.u32 %s185, 1
          %s1264 = scalar_lea.sflag [#allocation4], %s1263
          %s1265 = sand.u32 %s185, 1
          %s1266 = smul.addr %s1265, 64
          %s1267 = scalar_lea.vmem [#allocation3], %s1266
          %1268 = dma.done %s1264, 1024
        $region72: #{tpu_custom_call.1} parent=67 // pred_fallthru
          _
      $region68: #{tpu_custom_call.1} parent=5 // pred_fallthru
        _
    $region6: #{tpu_custom_call.1} parent=1 // loop_footer
      %s19 = sadd.s32 1, %s15
    $region7: #{tpu_custom_call.1} parent=1 // loop_footer_branch
      %14 = sbr.rel target = $region3
    $region8: #{tpu_custom_call.1} parent=1 // loop_exit
      _
    %1269 = vsyncpa [#allocation4], 1
    %s1270 = scalar_lea.sflag [#allocation4], 1
    %1271 = vsyncpa %s1270, 1

</llo_original>
